<compile_context>
chip_gen: v7x
topology: tpu7x:2x2x1
jax: 0.10.0
libtpu: 0.0.40
codegen_flags: <defaults>
</compile_context>

<pallas_src>
import functools
import math

import jax
import jax.numpy as jnp
from jax.experimental import pallas as pl
from jax.experimental.pallas import tpu as pltpu

_LANES = 128
_SUBLANES = 8


def _round_up(x, m):
    return (x + m - 1) // m * m


def _rvq_kernel(x_ref, wcat_ref, eadj_ref, ecat_ref, bout_ref, bin_ref,
                quant_ref, codes_ref, loss_ref, *,
                n_q, k_pad, tile_n, n_true, need_mask):
    j = pl.program_id(0)
    d = x_ref.shape[0]
    tn = x_ref.shape[1]

    resid = x_ref[...]                                   # (D, TN) f32
    quant = jnp.zeros_like(resid)

    # Hoisted out of the stage loop: codebook-index iota and frame-validity mask.
    k_iota = jax.lax.broadcasted_iota(jnp.int32, (k_pad, tn), 0)      # (K, TN)
    if need_mask:
        col = j * tile_n + jax.lax.broadcasted_iota(jnp.int32, (1, tn), 1)
        valid = (col < n_true).astype(jnp.float32)                    # (1, TN)

    for i in range(n_q):                                 # unrolled residual-stage loop
        # Fused project_in + distance + (loss path) codebook projection.
        m = jnp.dot(wcat_ref[i], resid.astype(jnp.bfloat16),
                    preferred_element_type=jnp.float32)               # (K+Dc, TN)
        dist = eadj_ref[i] - m[:k_pad]                                # (K, TN) f32
        y = m[k_pad:] + bin_ref[i]                                    # (Dc, TN)

        min_d = jnp.min(dist, axis=0, keepdims=True)                  # (1, TN)
        codes = jnp.min(jnp.where(dist <= min_d, k_iota, k_pad), axis=0)   # (TN,) i32
        onehot = (k_iota == codes[None, :]).astype(jnp.bfloat16)      # (K, TN)

        # Fused dequantize + project_out + (loss path) codebook vector.
        out2 = jnp.dot(ecat_ref[i], onehot,
                       preferred_element_type=jnp.float32)            # (D+Dc, TN)
        q = out2[:d] + bout_ref[i]                                    # (D, TN)
        q_cb = out2[d:]                                               # (Dc, TN)

        quant = quant + q
        resid = resid - q
        codes_ref[pl.ds(i, 1), :] = codes[None, :].astype(jnp.int32)

        diff = q_cb - y
        if need_mask:
            diff = diff * valid
        loss_ref[pl.ds(i, 1), :] = (jnp.zeros((1, loss_ref.shape[-1]), jnp.float32)
                                    + jnp.sum(diff * diff))

    quant_ref[...] = quant


def precompute_rvq_slabs(w_in, b_in, embed, w_out, b_out):
    """Fuse per-quantizer weights into MXU-ready slabs (frames-in-lane layout).

    w_in: (n_q, Dc, D); b_in: (n_q, 1, Dc); embed: (n_q, K, Dc);
    w_out: (n_q, D, Dc); b_out: (n_q, 1, D).
    """
    n_q, Dc, D = w_in.shape
    K = embed.shape[1]
    Kp = _round_up(K, _SUBLANES)

    # W_dist^T[q,k,d] = 2 * sum_c embed[q,k,c] * w_in[q,c,d]
    w_dist_t = 2.0 * jnp.einsum('qkc,qcd->qkd', embed, w_in)           # (n_q, K, D)
    # e_adj[q,k] = ||e_k||^2 - 2 <b_in, e_k>   (the ||y||^2 term is argmin-invariant)
    e_adj = (jnp.sum(embed * embed, axis=-1)
             - 2.0 * jnp.einsum('qoc,qkc->qk', b_in, embed))           # (n_q, K)
    # E_out^T[q,d,k] = sum_c w_out[q,d,c] * embed[q,k,c]
    e_out_t = jnp.einsum('qdc,qkc->qdk', w_out, embed)                 # (n_q, D, K)
    e_t = jnp.transpose(embed, (0, 2, 1))                              # (n_q, Dc, K)

    if Kp != K:  # pad codebook axis to a sublane multiple; padded codes can never win
        pk = Kp - K
        w_dist_t = jnp.pad(w_dist_t, ((0, 0), (0, pk), (0, 0)))
        e_adj = jnp.pad(e_adj, ((0, 0), (0, pk)), constant_values=1e30)
        e_out_t = jnp.pad(e_out_t, ((0, 0), (0, 0), (0, pk)))
        e_t = jnp.pad(e_t, ((0, 0), (0, 0), (0, pk)))

    wcat = jnp.concatenate([w_dist_t, w_in], axis=1).astype(jnp.bfloat16)   # (n_q, Kp+Dc, D)
    ecat = jnp.concatenate([e_out_t, e_t], axis=1).astype(jnp.bfloat16)     # (n_q, D+Dc, Kp)
    eadj_t = e_adj[..., None].astype(jnp.float32)                           # (n_q, Kp, 1)
    bout_t = jnp.transpose(b_out, (0, 2, 1)).astype(jnp.float32)            # (n_q, D, 1)
    bin_t = jnp.transpose(b_in, (0, 2, 1)).astype(jnp.float32)              # (n_q, Dc, 1)
    return wcat, eadj_t, ecat, bout_t, bin_t


def rvq_forward_core(x_t, wcat, eadj_t, ecat, bout_t, bin_t, *, tile_n=4096):
    """x_t: (D, N) frame matrix (frames in the lane dimension)."""
    n_q = wcat.shape[0]
    D = x_t.shape[0]
    Kp = eadj_t.shape[1]
    Dc = bin_t.shape[1]
    N = x_t.shape[1]
    assert D % _SUBLANES == 0

    n_lane = _round_up(max(N, 1), _LANES)
    if n_lane <= _LANES:
        TN = n_lane
    else:
        # Aim for >= 2 frame tiles so the "parallel" axis shards across v7x's two TCs.
        TN = min(_round_up(tile_n, _LANES), _round_up((n_lane + 1) // 2, _LANES))
    N_pad = _round_up(n_lane, TN)
    n_tiles = N_pad // TN
    x_pad = x_t if N_pad == N else jnp.pad(x_t, ((0, 0), (0, N_pad - N)))

    kernel = functools.partial(_rvq_kernel, n_q=n_q, k_pad=Kp, tile_n=TN,
                               n_true=N, need_mask=(N_pad != N))

    out_shapes = (
        jax.ShapeDtypeStruct((D, N_pad), jnp.float32),              # summed quantized
        jax.ShapeDtypeStruct((n_q, N_pad), jnp.int32),              # codes per quantizer
        jax.ShapeDtypeStruct((n_tiles, n_q, _LANES), jnp.float32),  # loss partial sums
    )
    const3 = lambda j: (0, 0, 0)
    grid_spec = pltpu.PrefetchScalarGridSpec(
        num_scalar_prefetch=0,
        grid=(n_tiles,),
        in_specs=[
            pl.BlockSpec((D, TN), lambda j: (0, j)),     # x tile (frames in lanes)
            pl.BlockSpec((n_q, Kp + Dc, D), const3),     # [W_dist^T ; W_in]   (resident, bf16)
            pl.BlockSpec((n_q, Kp, 1), const3),          # adjusted ||e||^2    (resident, f32)
            pl.BlockSpec((n_q, D + Dc, Kp), const3),     # [E_out^T ; E^T]     (resident, bf16)
            pl.BlockSpec((n_q, D, 1), const3),           # b_out^T             (resident)
            pl.BlockSpec((n_q, Dc, 1), const3),          # b_in^T              (resident)
        ],
        out_specs=[
            pl.BlockSpec((D, TN), lambda j: (0, j)),             # quantized sum
            pl.BlockSpec((n_q, TN), lambda j: (0, j)),           # codes
            pl.BlockSpec((None, n_q, _LANES), lambda j: (j, 0, 0)),  # loss partials
        ],
    )
    quant, codes, loss_part = pl.pallas_call(
        kernel,
        out_shape=out_shapes,
        grid_spec=grid_spec,
        compiler_params=pltpu.CompilerParams(
            dimension_semantics=("parallel",),
            vmem_limit_bytes=32 * 1024 * 1024),
    )(x_pad, wcat, eadj_t, ecat, bout_t, bin_t)

    losses = jnp.sum(loss_part[:, :, 0], axis=0) / float(N * Dc)     # (n_q,)
    return quant[:, :N], codes[:, :N], losses


class ResidualVectorQuantizerPallas:
    """JAX/Pallas port of encodec's ResidualVectorQuantizer (inference forward)."""

    def __init__(self, dimension=32, n_q=4, bins=128, codebook_dim=8, key=None):
        self.dimension = dimension
        self.n_q = n_q
        self.bins = bins
        self.codebook_dim = codebook_dim
        if key is None:
            key = jax.random.PRNGKey(0)
        k1, k2, k3, k4, k5 = jax.random.split(key, 5)
        lim_in = 1.0 / math.sqrt(dimension)
        lim_out = 1.0 / math.sqrt(codebook_dim)
        # project_in: Linear(dimension -> codebook_dim) per quantizer
        self.w_in = jax.random.uniform(k1, (n_q, codebook_dim, dimension),
                                       jnp.float32, -lim_in, lim_in)
        self.b_in = jax.random.uniform(k2, (n_q, 1, codebook_dim),
                                       jnp.float32, -lim_in, lim_in)
        # codebooks (bins x codebook_dim) per quantizer
        self.embed = jax.random.normal(k3, (n_q, bins, codebook_dim), jnp.float32)
        # project_out: Linear(codebook_dim -> dimension) per quantizer
        self.w_out = jax.random.uniform(k4, (n_q, dimension, codebook_dim),
                                        jnp.float32, -lim_out, lim_out)
        self.b_out = jax.random.uniform(k5, (n_q, 1, dimension),
                                        jnp.float32, -lim_out, lim_out)
        # Fused weight slabs are static per model: precompute once, slice per call.
        (self._wcat, self._eadj_t, self._ecat,
         self._bout_t, self._bin_t) = precompute_rvq_slabs(
            self.w_in, self.b_in, self.embed, self.w_out, self.b_out)

    def get_bandwidth_per_quantizer(self, frame_rate):
        return math.log2(self.bins) * frame_rate

    def get_num_quantizers_for_bandwidth(self, frame_rate, bandwidth=None):
        bw_per_q = self.get_bandwidth_per_quantizer(frame_rate)
        n_q = self.n_q
        if bandwidth and bandwidth > 0.0:
            n_q = int(max(1, math.floor(bandwidth * 1000 / bw_per_q)))
        return n_q

    def forward(self, x, frame_rate, bandwidth=None):
        # x: (B, D, T) float
        bw_per_q = self.get_bandwidth_per_quantizer(frame_rate)
        n_q = self.get_num_quantizers_for_bandwidth(frame_rate, bandwidth)
        B, D, T = x.shape
        assert D == self.dimension
        x_t = jnp.transpose(x, (1, 0, 2)).reshape(D, B * T).astype(jnp.float32)

        quant_t, codes, losses = rvq_forward_core(
            x_t,
            self._wcat[:n_q], self._eadj_t[:n_q], self._ecat[:n_q],
            self._bout_t[:n_q], self._bin_t[:n_q],
        )

        quantized = jnp.transpose(quant_t.reshape(D, B, T), (1, 0, 2)).astype(x.dtype)
        codes = codes.reshape(n_q, B, T)                       # (n_q, B, T) int32
        bw = jnp.asarray(n_q * bw_per_q, dtype=x.dtype)
        # TODO(synk): kmeans init / EMA codebook updates / dead-code expiry / STE are
        # training-only state updates and are not implemented.
        # NOTE: commit_loss is the training-time MSE (encodec eval mode returns zeros).
        return {
            "quantized": quantized,        # (B, D, T)
            "codes": codes,                # (n_q, B, T)
            "bandwidth": bw,               # scalar
            "commit_loss": losses,         # (n_q,)
            "codebook_loss": losses,       # (n_q,)
        }


if __name__ == "__main__":
    key = jax.random.PRNGKey(0)
    k_params, k_x = jax.random.split(key)

    B, D, T = 2, 32, 16           # small shapes (dimension=32, seq=16)
    n_q, bins, codebook_dim = 4, 128, 8

    rvq = ResidualVectorQuantizerPallas(dimension=D, n_q=n_q, bins=bins,
                                        codebook_dim=codebook_dim, key=k_params)
    x = jax.random.normal(k_x, (B, D, T), dtype=jnp.float32)

    out = rvq.forward(x, frame_rate=50, bandwidth=None)
    jax.block_until_ready(out["quantized"])
    jax.block_until_ready(out["codes"])
    jax.block_until_ready(out["commit_loss"])

    assert out["quantized"].shape == (B, D, T)
    assert out["codes"].shape == (n_q, B, T)
    assert out["commit_loss"].shape == (n_q,)
    assert bool(jnp.all(jnp.isfinite(out["quantized"])))
    assert bool(jnp.all((out["codes"] >= 0) & (out["codes"] < bins)))

    # Pure-JAX reference following the kernel's code choices (decode path), plus a
    # near-optimality check of the chosen codes (flip-insensitive, tolerance-based;
    # bf16 MXU operands may flip near-tie selections).
    x_flat = jnp.transpose(x, (0, 2, 1)).reshape(B * T, D)
    codes_flat = out["codes"].reshape(n_q, B * T)
    resid = x_flat
    quant_ref = jnp.zeros_like(x_flat)
    losses_ref = []
    codes_near_optimal = True
    for i in range(n_q):
        y = resid @ rvq.w_in[i].T + rvq.b_in[i]                          # (N, Dc)
        e = rvq.embed[i]
        d = (jnp.sum(y * y, -1, keepdims=True) - 2.0 * (y @ e.T)
             + jnp.sum(e * e, -1)[None, :])                              # (N, K)
        picked = jnp.take_along_axis(d, codes_flat[i][:, None], 1)[:, 0]
        codes_near_optimal &= bool(jnp.all(picked <= jnp.min(d, axis=1) + 0.1))
        q_cb = e[codes_flat[i]]                                          # (N, Dc)
        losses_ref.append(jnp.mean((q_cb - y) ** 2))
        q = q_cb @ rvq.w_out[i].T + rvq.b_out[i]
        quant_ref = quant_ref + q
        resid = resid - q
    losses_ref = jnp.stack(losses_ref)
    quant_flat = jnp.transpose(out["quantized"], (0, 2, 1)).reshape(B * T, D)

    assert codes_near_optimal
    assert float(jnp.max(jnp.abs(quant_flat - quant_ref))) < 5e-2
    assert float(jnp.max(jnp.abs(out["commit_loss"] - losses_ref))) < 1e-1

    print("KERNEL_OK")
</pallas_src>

<mosaic_0001>
module attributes {stable_mosaic.version = 11 : i64} {
  func.func @_rvq_kernel(%arg0: i32, %arg1: memref<32x128xf32, #tpu.memory_space<vmem>>, %arg2: memref<4x136x32xbf16, #tpu.memory_space<vmem>>, %arg3: memref<4x128x1xf32, #tpu.memory_space<vmem>>, %arg4: memref<4x40x128xbf16, #tpu.memory_space<vmem>>, %arg5: memref<4x32x1xf32, #tpu.memory_space<vmem>>, %arg6: memref<4x8x1xf32, #tpu.memory_space<vmem>>, %arg7: memref<32x128xf32, #tpu.memory_space<vmem>>, %arg8: memref<4x128xi32, #tpu.memory_space<vmem>>, %arg9: memref<1x4x128xf32, #tpu.memory_space<vmem>>) attributes {dimension_semantics = [#tpu.dimension_semantics<parallel>], iteration_bounds = array<i64: 1>, scalar_prefetch = 0 : i64, scratch_operands = 0 : i64, tpu.core_type = #tpu.core_type<tc>, window_params = [{transform_indices = @transform_0, window_bounds = array<i64: 32, 128>}, {pipeline_mode = #tpu.pipeline_mode<synchronous>, transform_indices = @transform_1, window_bounds = array<i64: 4, 136, 32>}, {pipeline_mode = #tpu.pipeline_mode<synchronous>, transform_indices = @transform_2, window_bounds = array<i64: 4, 128, 1>}, {pipeline_mode = #tpu.pipeline_mode<synchronous>, transform_indices = @transform_3, window_bounds = array<i64: 4, 40, 128>}, {pipeline_mode = #tpu.pipeline_mode<synchronous>, transform_indices = @transform_4, window_bounds = array<i64: 4, 32, 1>}, {pipeline_mode = #tpu.pipeline_mode<synchronous>, transform_indices = @transform_5, window_bounds = array<i64: 4, 8, 1>}, {transform_indices = @transform_6, window_bounds = array<i64: 32, 128>}, {transform_indices = @transform_7, window_bounds = array<i64: 4, 128>}, {transform_indices = @transform_8, window_bounds = array<i64: 1, 4, 128>}]} {
    %c0 = arith.constant 0 : index
    %c0_0 = arith.constant 0 : index
    %0 = vector.load %arg1[%c0, %c0_0] : memref<32x128xf32, #tpu.memory_space<vmem>>, vector<32x128xf32>
    %cst = arith.constant 0.000000e+00 : f32
    %1 = vector.broadcast %cst : f32 to vector<32x128xf32>
    %2 = tpu.iota {dimensions = array<i32: 0>} : vector<128x128xi32>
    %c128_i32 = arith.constant 128 : i32
    %3 = arith.muli %arg0, %c128_i32 : i32
    %4 = tpu.iota {dimensions = array<i32: 1>} : vector<1x128xi32>
    %5 = vector.broadcast %3 : i32 to vector<1x128xi32>
    %6 = arith.addi %5, %4 : vector<1x128xi32>
    %c32_i32 = arith.constant 32 : i32
    %7 = vector.broadcast %c32_i32 : i32 to vector<1x128xi32>
    %8 = arith.cmpi slt, %6, %7 : vector<1x128xi32>
    %9 = arith.extui %8 : vector<1x128xi1> to vector<1x128xi32>
    %10 = arith.sitofp %9 : vector<1x128xi32> to vector<1x128xf32>
    %c0_1 = arith.constant 0 : index
    %c0_2 = arith.constant 0 : index
    %c0_3 = arith.constant 0 : index
    %11 = vector.load %arg2[%c0_1, %c0_2, %c0_3] : memref<4x136x32xbf16, #tpu.memory_space<vmem>>, vector<1x136x32xbf16>
    %12 = vector.shape_cast %11 : vector<1x136x32xbf16> to vector<136x32xbf16>
    %13 = arith.truncf %0 : vector<32x128xf32> to vector<32x128xbf16>
    %cst_4 = arith.constant dense<0.000000e+00> : vector<136x128xf32>
    %14 = tpu.matmul %12, %13, %cst_4 {dimension_numbers = #tpu.dot_dimension_numbers<[1], [0], [0], [1], [0, 0, 1, 1], [], []>} : vector<136x32xbf16>, vector<32x128xbf16>, vector<136x128xf32> -> vector<136x128xf32>
    %c0_5 = arith.constant 0 : index
    %c0_6 = arith.constant 0 : index
    %c0_7 = arith.constant 0 : index
    %15 = vector.load %arg3[%c0_5, %c0_6, %c0_7] : memref<4x128x1xf32, #tpu.memory_space<vmem>>, vector<1x128x1xf32>
    %16 = vector.shape_cast %15 : vector<1x128x1xf32> to vector<128x1xf32>
    %17 = vector.extract_strided_slice %14 {offsets = [0, 0], sizes = [128, 128], strides = [1, 1]} : vector<136x128xf32> to vector<128x128xf32>
    %18 = vector.broadcast %16 : vector<128x1xf32> to vector<128x128xf32>
    %19 = arith.subf %18, %17 : vector<128x128xf32>
    %20 = vector.extract_strided_slice %14 {offsets = [128, 0], sizes = [8, 128], strides = [1, 1]} : vector<136x128xf32> to vector<8x128xf32>
    %c0_8 = arith.constant 0 : index
    %c0_9 = arith.constant 0 : index
    %c0_10 = arith.constant 0 : index
    %21 = vector.load %arg6[%c0_8, %c0_9, %c0_10] : memref<4x8x1xf32, #tpu.memory_space<vmem>>, vector<1x8x1xf32>
    %22 = vector.shape_cast %21 : vector<1x8x1xf32> to vector<8x1xf32>
    %23 = vector.broadcast %22 : vector<8x1xf32> to vector<8x128xf32>
    %24 = arith.addf %20, %23 : vector<8x128xf32>
    %cst_11 = arith.constant dense<0x7F800000> : vector<128xf32>
    %25 = vector.multi_reduction <minimumf>, %19, %cst_11 [0] : vector<128x128xf32> to vector<128xf32>
    %26 = vector.shape_cast %25 : vector<128xf32> to vector<1x128xf32>
    %27 = vector.broadcast %26 : vector<1x128xf32> to vector<128x128xf32>
    %28 = arith.cmpf ole, %19, %27 : vector<128x128xf32>
    %c128_i32_12 = arith.constant 128 : i32
    %29 = vector.broadcast %c128_i32_12 : i32 to vector<128x128xi32>
    %30 = arith.select %28, %2, %29 : vector<128x128xi1>, vector<128x128xi32>
    %cst_13 = arith.constant dense<2147483647> : vector<128xi32>
    %31 = vector.multi_reduction <minsi>, %30, %cst_13 [0] : vector<128x128xi32> to vector<128xi32>
    %32 = vector.shape_cast %31 : vector<128xi32> to vector<1x128xi32>
    %33 = vector.broadcast %32 : vector<1x128xi32> to vector<128x128xi32>
    %34 = arith.cmpi eq, %2, %33 : vector<128x128xi32>
    %35 = arith.extui %34 : vector<128x128xi1> to vector<128x128xi32>
    %36 = arith.sitofp %35 : vector<128x128xi32> to vector<128x128xf32>
    %37 = arith.truncf %36 : vector<128x128xf32> to vector<128x128xbf16>
    %c0_14 = arith.constant 0 : index
    %c0_15 = arith.constant 0 : index
    %c0_16 = arith.constant 0 : index
    %38 = vector.load %arg4[%c0_14, %c0_15, %c0_16] : memref<4x40x128xbf16, #tpu.memory_space<vmem>>, vector<1x40x128xbf16>
    %39 = vector.shape_cast %38 : vector<1x40x128xbf16> to vector<40x128xbf16>
    %cst_17 = arith.constant dense<0.000000e+00> : vector<40x128xf32>
    %40 = tpu.matmul %39, %37, %cst_17 {dimension_numbers = #tpu.dot_dimension_numbers<[1], [0], [0], [1], [0, 0, 1, 1], [], []>} : vector<40x128xbf16>, vector<128x128xbf16>, vector<40x128xf32> -> vector<40x128xf32>
    %41 = vector.extract_strided_slice %40 {offsets = [0, 0], sizes = [32, 128], strides = [1, 1]} : vector<40x128xf32> to vector<32x128xf32>
    %c0_18 = arith.constant 0 : index
    %c0_19 = arith.constant 0 : index
    %c0_20 = arith.constant 0 : index
    %42 = vector.load %arg5[%c0_18, %c0_19, %c0_20] : memref<4x32x1xf32, #tpu.memory_space<vmem>>, vector<1x32x1xf32>
    %43 = vector.shape_cast %42 : vector<1x32x1xf32> to vector<32x1xf32>
    %44 = vector.broadcast %43 : vector<32x1xf32> to vector<32x128xf32>
    %45 = arith.addf %41, %44 : vector<32x128xf32>
    %46 = vector.extract_strided_slice %40 {offsets = [32, 0], sizes = [8, 128], strides = [1, 1]} : vector<40x128xf32> to vector<8x128xf32>
    %47 = arith.addf %1, %45 : vector<32x128xf32>
    %48 = arith.subf %0, %45 : vector<32x128xf32>
    %49 = vector.shape_cast %31 : vector<128xi32> to vector<1x128xi32>
    %c0_21 = arith.constant 0 : index
    %c0_22 = arith.constant 0 : index
    %50 = vector.load %arg8[%c0_21, %c0_22] : memref<4x128xi32, #tpu.memory_space<vmem>>, vector<1x128xi32>
    tpu.vector_store %arg8[%c0_21, %c0_22], %49 {strides = array<i32>} : memref<4x128xi32, #tpu.memory_space<vmem>>, vector<1x128xi32>,
    %51 = arith.subf %46, %24 : vector<8x128xf32>
    %52 = vector.broadcast %10 : vector<1x128xf32> to vector<8x128xf32>
    %53 = arith.mulf %51, %52 : vector<8x128xf32>
    %cst_23 = arith.constant 0.000000e+00 : f32
    %54 = vector.broadcast %cst_23 : f32 to vector<1x128xf32>
    %55 = arith.mulf %53, %53 : vector<8x128xf32>
    %56 = vector.shape_cast %55 : vector<8x128xf32> to vector<1x8x128xf32>
    %cst_24 = arith.constant dense<0.000000e+00> : vector<1xf32>
    %57 = vector.multi_reduction <add>, %56, %cst_24 [1, 2] : vector<1x8x128xf32> to vector<1xf32>
    %58 = vector.shape_cast %57 : vector<1xf32> to vector<1x1x1xf32>
    %59 = vector.extract %58[0, 0, 0] : f32 from vector<1x1x1xf32>
    %60 = vector.broadcast %59 : f32 to vector<1x128xf32>
    %61 = arith.addf %54, %60 : vector<1x128xf32>
    %c0_25 = arith.constant 0 : index
    %c0_26 = arith.constant 0 : index
    %c0_27 = arith.constant 0 : index
    %62 = vector.load %arg9[%c0_25, %c0_26, %c0_27] : memref<1x4x128xf32, #tpu.memory_space<vmem>>, vector<1x1x128xf32>
    %63 = vector.shape_cast %62 : vector<1x1x128xf32> to vector<1x128xf32>
    %64 = vector.shape_cast %61 : vector<1x128xf32> to vector<1x1x128xf32>
    tpu.vector_store %arg9[%c0_25, %c0_26, %c0_27], %64 {strides = array<i32>} : memref<1x4x128xf32, #tpu.memory_space<vmem>>, vector<1x1x128xf32>,
    %c1 = arith.constant 1 : index
    %c0_28 = arith.constant 0 : index
    %c0_29 = arith.constant 0 : index
    %65 = vector.load %arg2[%c1, %c0_28, %c0_29] : memref<4x136x32xbf16, #tpu.memory_space<vmem>>, vector<1x136x32xbf16>
    %66 = vector.shape_cast %65 : vector<1x136x32xbf16> to vector<136x32xbf16>
    %67 = arith.truncf %48 : vector<32x128xf32> to vector<32x128xbf16>
    %cst_30 = arith.constant dense<0.000000e+00> : vector<136x128xf32>
    %68 = tpu.matmul %66, %67, %cst_30 {dimension_numbers = #tpu.dot_dimension_numbers<[1], [0], [0], [1], [0, 0, 1, 1], [], []>} : vector<136x32xbf16>, vector<32x128xbf16>, vector<136x128xf32> -> vector<136x128xf32>
    %c1_31 = arith.constant 1 : index
    %c0_32 = arith.constant 0 : index
    %c0_33 = arith.constant 0 : index
    %69 = vector.load %arg3[%c1_31, %c0_32, %c0_33] : memref<4x128x1xf32, #tpu.memory_space<vmem>>, vector<1x128x1xf32>
    %70 = vector.shape_cast %69 : vector<1x128x1xf32> to vector<128x1xf32>
    %71 = vector.extract_strided_slice %68 {offsets = [0, 0], sizes = [128, 128], strides = [1, 1]} : vector<136x128xf32> to vector<128x128xf32>
    %72 = vector.broadcast %70 : vector<128x1xf32> to vector<128x128xf32>
    %73 = arith.subf %72, %71 : vector<128x128xf32>
    %74 = vector.extract_strided_slice %68 {offsets = [128, 0], sizes = [8, 128], strides = [1, 1]} : vector<136x128xf32> to vector<8x128xf32>
    %c1_34 = arith.constant 1 : index
    %c0_35 = arith.constant 0 : index
    %c0_36 = arith.constant 0 : index
    %75 = vector.load %arg6[%c1_34, %c0_35, %c0_36] : memref<4x8x1xf32, #tpu.memory_space<vmem>>, vector<1x8x1xf32>
    %76 = vector.shape_cast %75 : vector<1x8x1xf32> to vector<8x1xf32>
    %77 = vector.broadcast %76 : vector<8x1xf32> to vector<8x128xf32>
    %78 = arith.addf %74, %77 : vector<8x128xf32>
    %cst_37 = arith.constant dense<0x7F800000> : vector<128xf32>
    %79 = vector.multi_reduction <minimumf>, %73, %cst_37 [0] : vector<128x128xf32> to vector<128xf32>
    %80 = vector.shape_cast %79 : vector<128xf32> to vector<1x128xf32>
    %81 = vector.broadcast %80 : vector<1x128xf32> to vector<128x128xf32>
    %82 = arith.cmpf ole, %73, %81 : vector<128x128xf32>
    %c128_i32_38 = arith.constant 128 : i32
    %83 = vector.broadcast %c128_i32_38 : i32 to vector<128x128xi32>
    %84 = arith.select %82, %2, %83 : vector<128x128xi1>, vector<128x128xi32>
    %cst_39 = arith.constant dense<2147483647> : vector<128xi32>
    %85 = vector.multi_reduction <minsi>, %84, %cst_39 [0] : vector<128x128xi32> to vector<128xi32>
    %86 = vector.shape_cast %85 : vector<128xi32> to vector<1x128xi32>
    %87 = vector.broadcast %86 : vector<1x128xi32> to vector<128x128xi32>
    %88 = arith.cmpi eq, %2, %87 : vector<128x128xi32>
    %89 = arith.extui %88 : vector<128x128xi1> to vector<128x128xi32>
    %90 = arith.sitofp %89 : vector<128x128xi32> to vector<128x128xf32>
    %91 = arith.truncf %90 : vector<128x128xf32> to vector<128x128xbf16>
    %c1_40 = arith.constant 1 : index
    %c0_41 = arith.constant 0 : index
    %c0_42 = arith.constant 0 : index
    %92 = vector.load %arg4[%c1_40, %c0_41, %c0_42] : memref<4x40x128xbf16, #tpu.memory_space<vmem>>, vector<1x40x128xbf16>
    %93 = vector.shape_cast %92 : vector<1x40x128xbf16> to vector<40x128xbf16>
    %cst_43 = arith.constant dense<0.000000e+00> : vector<40x128xf32>
    %94 = tpu.matmul %93, %91, %cst_43 {dimension_numbers = #tpu.dot_dimension_numbers<[1], [0], [0], [1], [0, 0, 1, 1], [], []>} : vector<40x128xbf16>, vector<128x128xbf16>, vector<40x128xf32> -> vector<40x128xf32>
    %95 = vector.extract_strided_slice %94 {offsets = [0, 0], sizes = [32, 128], strides = [1, 1]} : vector<40x128xf32> to vector<32x128xf32>
    %c1_44 = arith.constant 1 : index
    %c0_45 = arith.constant 0 : index
    %c0_46 = arith.constant 0 : index
    %96 = vector.load %arg5[%c1_44, %c0_45, %c0_46] : memref<4x32x1xf32, #tpu.memory_space<vmem>>, vector<1x32x1xf32>
    %97 = vector.shape_cast %96 : vector<1x32x1xf32> to vector<32x1xf32>
    %98 = vector.broadcast %97 : vector<32x1xf32> to vector<32x128xf32>
    %99 = arith.addf %95, %98 : vector<32x128xf32>
    %100 = vector.extract_strided_slice %94 {offsets = [32, 0], sizes = [8, 128], strides = [1, 1]} : vector<40x128xf32> to vector<8x128xf32>
    %101 = arith.addf %47, %99 : vector<32x128xf32>
    %102 = arith.subf %48, %99 : vector<32x128xf32>
    %103 = vector.shape_cast %85 : vector<128xi32> to vector<1x128xi32>
    %c1_47 = arith.constant 1 : index
    %c0_48 = arith.constant 0 : index
    %104 = vector.load %arg8[%c1_47, %c0_48] : memref<4x128xi32, #tpu.memory_space<vmem>>, vector<1x128xi32>
    tpu.vector_store %arg8[%c1_47, %c0_48], %103 {strides = array<i32>} : memref<4x128xi32, #tpu.memory_space<vmem>>, vector<1x128xi32>,
    %105 = arith.subf %100, %78 : vector<8x128xf32>
    %106 = vector.broadcast %10 : vector<1x128xf32> to vector<8x128xf32>
    %107 = arith.mulf %105, %106 : vector<8x128xf32>
    %cst_49 = arith.constant 0.000000e+00 : f32
    %108 = vector.broadcast %cst_49 : f32 to vector<1x128xf32>
    %109 = arith.mulf %107, %107 : vector<8x128xf32>
    %110 = vector.shape_cast %109 : vector<8x128xf32> to vector<1x8x128xf32>
    %cst_50 = arith.constant dense<0.000000e+00> : vector<1xf32>
    %111 = vector.multi_reduction <add>, %110, %cst_50 [1, 2] : vector<1x8x128xf32> to vector<1xf32>
    %112 = vector.shape_cast %111 : vector<1xf32> to vector<1x1x1xf32>
    %113 = vector.extract %112[0, 0, 0] : f32 from vector<1x1x1xf32>
    %114 = vector.broadcast %113 : f32 to vector<1x128xf32>
    %115 = arith.addf %108, %114 : vector<1x128xf32>
    %c0_51 = arith.constant 0 : index
    %c1_52 = arith.constant 1 : index
    %c0_53 = arith.constant 0 : index
    %116 = vector.load %arg9[%c0_51, %c1_52, %c0_53] : memref<1x4x128xf32, #tpu.memory_space<vmem>>, vector<1x1x128xf32>
    %117 = vector.shape_cast %116 : vector<1x1x128xf32> to vector<1x128xf32>
    %118 = vector.shape_cast %115 : vector<1x128xf32> to vector<1x1x128xf32>
    tpu.vector_store %arg9[%c0_51, %c1_52, %c0_53], %118 {strides = array<i32>} : memref<1x4x128xf32, #tpu.memory_space<vmem>>, vector<1x1x128xf32>,
    %c2 = arith.constant 2 : index
    %c0_54 = arith.constant 0 : index
    %c0_55 = arith.constant 0 : index
    %119 = vector.load %arg2[%c2, %c0_54, %c0_55] : memref<4x136x32xbf16, #tpu.memory_space<vmem>>, vector<1x136x32xbf16>
    %120 = vector.shape_cast %119 : vector<1x136x32xbf16> to vector<136x32xbf16>
    %121 = arith.truncf %102 : vector<32x128xf32> to vector<32x128xbf16>
    %cst_56 = arith.constant dense<0.000000e+00> : vector<136x128xf32>
    %122 = tpu.matmul %120, %121, %cst_56 {dimension_numbers = #tpu.dot_dimension_numbers<[1], [0], [0], [1], [0, 0, 1, 1], [], []>} : vector<136x32xbf16>, vector<32x128xbf16>, vector<136x128xf32> -> vector<136x128xf32>
    %c2_57 = arith.constant 2 : index
    %c0_58 = arith.constant 0 : index
    %c0_59 = arith.constant 0 : index
    %123 = vector.load %arg3[%c2_57, %c0_58, %c0_59] : memref<4x128x1xf32, #tpu.memory_space<vmem>>, vector<1x128x1xf32>
    %124 = vector.shape_cast %123 : vector<1x128x1xf32> to vector<128x1xf32>
    %125 = vector.extract_strided_slice %122 {offsets = [0, 0], sizes = [128, 128], strides = [1, 1]} : vector<136x128xf32> to vector<128x128xf32>
    %126 = vector.broadcast %124 : vector<128x1xf32> to vector<128x128xf32>
    %127 = arith.subf %126, %125 : vector<128x128xf32>
    %128 = vector.extract_strided_slice %122 {offsets = [128, 0], sizes = [8, 128], strides = [1, 1]} : vector<136x128xf32> to vector<8x128xf32>
    %c2_60 = arith.constant 2 : index
    %c0_61 = arith.constant 0 : index
    %c0_62 = arith.constant 0 : index
    %129 = vector.load %arg6[%c2_60, %c0_61, %c0_62] : memref<4x8x1xf32, #tpu.memory_space<vmem>>, vector<1x8x1xf32>
    %130 = vector.shape_cast %129 : vector<1x8x1xf32> to vector<8x1xf32>
    %131 = vector.broadcast %130 : vector<8x1xf32> to vector<8x128xf32>
    %132 = arith.addf %128, %131 : vector<8x128xf32>
    %cst_63 = arith.constant dense<0x7F800000> : vector<128xf32>
    %133 = vector.multi_reduction <minimumf>, %127, %cst_63 [0] : vector<128x128xf32> to vector<128xf32>
    %134 = vector.shape_cast %133 : vector<128xf32> to vector<1x128xf32>
    %135 = vector.broadcast %134 : vector<1x128xf32> to vector<128x128xf32>
    %136 = arith.cmpf ole, %127, %135 : vector<128x128xf32>
    %c128_i32_64 = arith.constant 128 : i32
    %137 = vector.broadcast %c128_i32_64 : i32 to vector<128x128xi32>
    %138 = arith.select %136, %2, %137 : vector<128x128xi1>, vector<128x128xi32>
    %cst_65 = arith.constant dense<2147483647> : vector<128xi32>
    %139 = vector.multi_reduction <minsi>, %138, %cst_65 [0] : vector<128x128xi32> to vector<128xi32>
    %140 = vector.shape_cast %139 : vector<128xi32> to vector<1x128xi32>
    %141 = vector.broadcast %140 : vector<1x128xi32> to vector<128x128xi32>
    %142 = arith.cmpi eq, %2, %141 : vector<128x128xi32>
    %143 = arith.extui %142 : vector<128x128xi1> to vector<128x128xi32>
    %144 = arith.sitofp %143 : vector<128x128xi32> to vector<128x128xf32>
    %145 = arith.truncf %144 : vector<128x128xf32> to vector<128x128xbf16>
    %c2_66 = arith.constant 2 : index
    %c0_67 = arith.constant 0 : index
    %c0_68 = arith.constant 0 : index
    %146 = vector.load %arg4[%c2_66, %c0_67, %c0_68] : memref<4x40x128xbf16, #tpu.memory_space<vmem>>, vector<1x40x128xbf16>
    %147 = vector.shape_cast %146 : vector<1x40x128xbf16> to vector<40x128xbf16>
    %cst_69 = arith.constant dense<0.000000e+00> : vector<40x128xf32>
    %148 = tpu.matmul %147, %145, %cst_69 {dimension_numbers = #tpu.dot_dimension_numbers<[1], [0], [0], [1], [0, 0, 1, 1], [], []>} : vector<40x128xbf16>, vector<128x128xbf16>, vector<40x128xf32> -> vector<40x128xf32>
    %149 = vector.extract_strided_slice %148 {offsets = [0, 0], sizes = [32, 128], strides = [1, 1]} : vector<40x128xf32> to vector<32x128xf32>
    %c2_70 = arith.constant 2 : index
    %c0_71 = arith.constant 0 : index
    %c0_72 = arith.constant 0 : index
    %150 = vector.load %arg5[%c2_70, %c0_71, %c0_72] : memref<4x32x1xf32, #tpu.memory_space<vmem>>, vector<1x32x1xf32>
    %151 = vector.shape_cast %150 : vector<1x32x1xf32> to vector<32x1xf32>
    %152 = vector.broadcast %151 : vector<32x1xf32> to vector<32x128xf32>
    %153 = arith.addf %149, %152 : vector<32x128xf32>
    %154 = vector.extract_strided_slice %148 {offsets = [32, 0], sizes = [8, 128], strides = [1, 1]} : vector<40x128xf32> to vector<8x128xf32>
    %155 = arith.addf %101, %153 : vector<32x128xf32>
    %156 = arith.subf %102, %153 : vector<32x128xf32>
    %157 = vector.shape_cast %139 : vector<128xi32> to vector<1x128xi32>
    %c2_73 = arith.constant 2 : index
    %c0_74 = arith.constant 0 : index
    %158 = vector.load %arg8[%c2_73, %c0_74] : memref<4x128xi32, #tpu.memory_space<vmem>>, vector<1x128xi32>
    tpu.vector_store %arg8[%c2_73, %c0_74], %157 {strides = array<i32>} : memref<4x128xi32, #tpu.memory_space<vmem>>, vector<1x128xi32>,
    %159 = arith.subf %154, %132 : vector<8x128xf32>
    %160 = vector.broadcast %10 : vector<1x128xf32> to vector<8x128xf32>
    %161 = arith.mulf %159, %160 : vector<8x128xf32>
    %cst_75 = arith.constant 0.000000e+00 : f32
    %162 = vector.broadcast %cst_75 : f32 to vector<1x128xf32>
    %163 = arith.mulf %161, %161 : vector<8x128xf32>
    %164 = vector.shape_cast %163 : vector<8x128xf32> to vector<1x8x128xf32>
    %cst_76 = arith.constant dense<0.000000e+00> : vector<1xf32>
    %165 = vector.multi_reduction <add>, %164, %cst_76 [1, 2] : vector<1x8x128xf32> to vector<1xf32>
    %166 = vector.shape_cast %165 : vector<1xf32> to vector<1x1x1xf32>
    %167 = vector.extract %166[0, 0, 0] : f32 from vector<1x1x1xf32>
    %168 = vector.broadcast %167 : f32 to vector<1x128xf32>
    %169 = arith.addf %162, %168 : vector<1x128xf32>
    %c0_77 = arith.constant 0 : index
    %c2_78 = arith.constant 2 : index
    %c0_79 = arith.constant 0 : index
    %170 = vector.load %arg9[%c0_77, %c2_78, %c0_79] : memref<1x4x128xf32, #tpu.memory_space<vmem>>, vector<1x1x128xf32>
    %171 = vector.shape_cast %170 : vector<1x1x128xf32> to vector<1x128xf32>
    %172 = vector.shape_cast %169 : vector<1x128xf32> to vector<1x1x128xf32>
    tpu.vector_store %arg9[%c0_77, %c2_78, %c0_79], %172 {strides = array<i32>} : memref<1x4x128xf32, #tpu.memory_space<vmem>>, vector<1x1x128xf32>,
    %c3 = arith.constant 3 : index
    %c0_80 = arith.constant 0 : index
    %c0_81 = arith.constant 0 : index
    %173 = vector.load %arg2[%c3, %c0_80, %c0_81] : memref<4x136x32xbf16, #tpu.memory_space<vmem>>, vector<1x136x32xbf16>
    %174 = vector.shape_cast %173 : vector<1x136x32xbf16> to vector<136x32xbf16>
    %175 = arith.truncf %156 : vector<32x128xf32> to vector<32x128xbf16>
    %cst_82 = arith.constant dense<0.000000e+00> : vector<136x128xf32>
    %176 = tpu.matmul %174, %175, %cst_82 {dimension_numbers = #tpu.dot_dimension_numbers<[1], [0], [0], [1], [0, 0, 1, 1], [], []>} : vector<136x32xbf16>, vector<32x128xbf16>, vector<136x128xf32> -> vector<136x128xf32>
    %c3_83 = arith.constant 3 : index
    %c0_84 = arith.constant 0 : index
    %c0_85 = arith.constant 0 : index
    %177 = vector.load %arg3[%c3_83, %c0_84, %c0_85] : memref<4x128x1xf32, #tpu.memory_space<vmem>>, vector<1x128x1xf32>
    %178 = vector.shape_cast %177 : vector<1x128x1xf32> to vector<128x1xf32>
    %179 = vector.extract_strided_slice %176 {offsets = [0, 0], sizes = [128, 128], strides = [1, 1]} : vector<136x128xf32> to vector<128x128xf32>
    %180 = vector.broadcast %178 : vector<128x1xf32> to vector<128x128xf32>
    %181 = arith.subf %180, %179 : vector<128x128xf32>
    %182 = vector.extract_strided_slice %176 {offsets = [128, 0], sizes = [8, 128], strides = [1, 1]} : vector<136x128xf32> to vector<8x128xf32>
    %c3_86 = arith.constant 3 : index
    %c0_87 = arith.constant 0 : index
    %c0_88 = arith.constant 0 : index
    %183 = vector.load %arg6[%c3_86, %c0_87, %c0_88] : memref<4x8x1xf32, #tpu.memory_space<vmem>>, vector<1x8x1xf32>
    %184 = vector.shape_cast %183 : vector<1x8x1xf32> to vector<8x1xf32>
    %185 = vector.broadcast %184 : vector<8x1xf32> to vector<8x128xf32>
    %186 = arith.addf %182, %185 : vector<8x128xf32>
    %cst_89 = arith.constant dense<0x7F800000> : vector<128xf32>
    %187 = vector.multi_reduction <minimumf>, %181, %cst_89 [0] : vector<128x128xf32> to vector<128xf32>
    %188 = vector.shape_cast %187 : vector<128xf32> to vector<1x128xf32>
    %189 = vector.broadcast %188 : vector<1x128xf32> to vector<128x128xf32>
    %190 = arith.cmpf ole, %181, %189 : vector<128x128xf32>
    %c128_i32_90 = arith.constant 128 : i32
    %191 = vector.broadcast %c128_i32_90 : i32 to vector<128x128xi32>
    %192 = arith.select %190, %2, %191 : vector<128x128xi1>, vector<128x128xi32>
    %cst_91 = arith.constant dense<2147483647> : vector<128xi32>
    %193 = vector.multi_reduction <minsi>, %192, %cst_91 [0] : vector<128x128xi32> to vector<128xi32>
    %194 = vector.shape_cast %193 : vector<128xi32> to vector<1x128xi32>
    %195 = vector.broadcast %194 : vector<1x128xi32> to vector<128x128xi32>
    %196 = arith.cmpi eq, %2, %195 : vector<128x128xi32>
    %197 = arith.extui %196 : vector<128x128xi1> to vector<128x128xi32>
    %198 = arith.sitofp %197 : vector<128x128xi32> to vector<128x128xf32>
    %199 = arith.truncf %198 : vector<128x128xf32> to vector<128x128xbf16>
    %c3_92 = arith.constant 3 : index
    %c0_93 = arith.constant 0 : index
    %c0_94 = arith.constant 0 : index
    %200 = vector.load %arg4[%c3_92, %c0_93, %c0_94] : memref<4x40x128xbf16, #tpu.memory_space<vmem>>, vector<1x40x128xbf16>
    %201 = vector.shape_cast %200 : vector<1x40x128xbf16> to vector<40x128xbf16>
    %cst_95 = arith.constant dense<0.000000e+00> : vector<40x128xf32>
    %202 = tpu.matmul %201, %199, %cst_95 {dimension_numbers = #tpu.dot_dimension_numbers<[1], [0], [0], [1], [0, 0, 1, 1], [], []>} : vector<40x128xbf16>, vector<128x128xbf16>, vector<40x128xf32> -> vector<40x128xf32>
    %203 = vector.extract_strided_slice %202 {offsets = [0, 0], sizes = [32, 128], strides = [1, 1]} : vector<40x128xf32> to vector<32x128xf32>
    %c3_96 = arith.constant 3 : index
    %c0_97 = arith.constant 0 : index
    %c0_98 = arith.constant 0 : index
    %204 = vector.load %arg5[%c3_96, %c0_97, %c0_98] : memref<4x32x1xf32, #tpu.memory_space<vmem>>, vector<1x32x1xf32>
    %205 = vector.shape_cast %204 : vector<1x32x1xf32> to vector<32x1xf32>
    %206 = vector.broadcast %205 : vector<32x1xf32> to vector<32x128xf32>
    %207 = arith.addf %203, %206 : vector<32x128xf32>
    %208 = vector.extract_strided_slice %202 {offsets = [32, 0], sizes = [8, 128], strides = [1, 1]} : vector<40x128xf32> to vector<8x128xf32>
    %209 = arith.addf %155, %207 : vector<32x128xf32>
    %210 = vector.shape_cast %193 : vector<128xi32> to vector<1x128xi32>
    %c3_99 = arith.constant 3 : index
    %c0_100 = arith.constant 0 : index
    %211 = vector.load %arg8[%c3_99, %c0_100] : memref<4x128xi32, #tpu.memory_space<vmem>>, vector<1x128xi32>
    tpu.vector_store %arg8[%c3_99, %c0_100], %210 {strides = array<i32>} : memref<4x128xi32, #tpu.memory_space<vmem>>, vector<1x128xi32>,
    %212 = arith.subf %208, %186 : vector<8x128xf32>
    %213 = vector.broadcast %10 : vector<1x128xf32> to vector<8x128xf32>
    %214 = arith.mulf %212, %213 : vector<8x128xf32>
    %cst_101 = arith.constant 0.000000e+00 : f32
    %215 = vector.broadcast %cst_101 : f32 to vector<1x128xf32>
    %216 = arith.mulf %214, %214 : vector<8x128xf32>
    %217 = vector.shape_cast %216 : vector<8x128xf32> to vector<1x8x128xf32>
    %cst_102 = arith.constant dense<0.000000e+00> : vector<1xf32>
    %218 = vector.multi_reduction <add>, %217, %cst_102 [1, 2] : vector<1x8x128xf32> to vector<1xf32>
    %219 = vector.shape_cast %218 : vector<1xf32> to vector<1x1x1xf32>
    %220 = vector.extract %219[0, 0, 0] : f32 from vector<1x1x1xf32>
    %221 = vector.broadcast %220 : f32 to vector<1x128xf32>
    %222 = arith.addf %215, %221 : vector<1x128xf32>
    %c0_103 = arith.constant 0 : index
    %c3_104 = arith.constant 3 : index
    %c0_105 = arith.constant 0 : index
    %223 = vector.load %arg9[%c0_103, %c3_104, %c0_105] : memref<1x4x128xf32, #tpu.memory_space<vmem>>, vector<1x1x128xf32>
    %224 = vector.shape_cast %223 : vector<1x1x128xf32> to vector<1x128xf32>
    %225 = vector.shape_cast %222 : vector<1x128xf32> to vector<1x1x128xf32>
    tpu.vector_store %arg9[%c0_103, %c3_104, %c0_105], %225 {strides = array<i32>} : memref<1x4x128xf32, #tpu.memory_space<vmem>>, vector<1x1x128xf32>,
    %c0_106 = arith.constant 0 : index
    %c0_107 = arith.constant 0 : index
    %226 = vector.load %arg7[%c0_106, %c0_107] : memref<32x128xf32, #tpu.memory_space<vmem>>, vector<32x128xf32>
    tpu.vector_store %arg7[%c0_106, %c0_107], %209 {strides = array<i32>} : memref<32x128xf32, #tpu.memory_space<vmem>>, vector<32x128xf32>,
    return
  }
  func.func @transform_0(%arg0: i32) -> (i32, i32) {
    %c0_i32 = arith.constant 0 : i32
    %c0_i32_0 = arith.constant 0 : i32
    return %c0_i32, %arg0 : i32, i32
  }
  func.func @transform_1(%arg0: i32) -> (i32, i32, i32) {
    %c0_i32 = arith.constant 0 : i32
    %c0_i32_0 = arith.constant 0 : i32
    %c0_i32_1 = arith.constant 0 : i32
    %c0_i32_2 = arith.constant 0 : i32
    return %c0_i32, %c0_i32_0, %c0_i32_1 : i32, i32, i32
  }
  func.func @transform_2(%arg0: i32) -> (i32, i32, i32) {
    %c0_i32 = arith.constant 0 : i32
    %c0_i32_0 = arith.constant 0 : i32
    %c0_i32_1 = arith.constant 0 : i32
    %c0_i32_2 = arith.constant 0 : i32
    return %c0_i32, %c0_i32_0, %c0_i32_1 : i32, i32, i32
  }
  func.func @transform_3(%arg0: i32) -> (i32, i32, i32) {
    %c0_i32 = arith.constant 0 : i32
    %c0_i32_0 = arith.constant 0 : i32
    %c0_i32_1 = arith.constant 0 : i32
    %c0_i32_2 = arith.constant 0 : i32
    return %c0_i32, %c0_i32_0, %c0_i32_1 : i32, i32, i32
  }
  func.func @transform_4(%arg0: i32) -> (i32, i32, i32) {
    %c0_i32 = arith.constant 0 : i32
    %c0_i32_0 = arith.constant 0 : i32
    %c0_i32_1 = arith.constant 0 : i32
    %c0_i32_2 = arith.constant 0 : i32
    return %c0_i32, %c0_i32_0, %c0_i32_1 : i32, i32, i32
  }
  func.func @transform_5(%arg0: i32) -> (i32, i32, i32) {
    %c0_i32 = arith.constant 0 : i32
    %c0_i32_0 = arith.constant 0 : i32
    %c0_i32_1 = arith.constant 0 : i32
    %c0_i32_2 = arith.constant 0 : i32
    return %c0_i32, %c0_i32_0, %c0_i32_1 : i32, i32, i32
  }
  func.func @transform_6(%arg0: i32) -> (i32, i32) {
    %c0_i32 = arith.constant 0 : i32
    %c0_i32_0 = arith.constant 0 : i32
    return %c0_i32, %arg0 : i32, i32
  }
  func.func @transform_7(%arg0: i32) -> (i32, i32) {
    %c0_i32 = arith.constant 0 : i32
    %c0_i32_0 = arith.constant 0 : i32
    return %c0_i32, %arg0 : i32, i32
  }
  func.func @transform_8(%arg0: i32) -> (i32, i32, i32) {
    %c0_i32 = arith.constant 0 : i32
    %c0_i32_0 = arith.constant 0 : i32
    %c0_i32_1 = arith.constant 0 : i32
    return %arg0, %c0_i32, %c0_i32_0 : i32, i32, i32
  }
}

</mosaic_0001>

<llo_original>
// kernel: tpu_custom_call.1
$region0: #{tpu_custom_call.1}
  #allocation0 [shape = 'u32[]', space=smem, size = 0x4, offset = 0x4, fixed_abs, tag = 'smem constant byte address 0x4 - core index']
  #allocation1 [shape = 'u32[144,128]{1,0:T(1,128)}', space=vmem, size = 0x12000, scoped, tag = 'internal scratch']
  %s0 = inlined_call_operand.vmem [shape: f32[32,128], index: 0, kind: input, shape index: {}]
  %s1 = inlined_call_operand.vmem [shape: bf16[4,136,32], index: 1, kind: input, shape index: {}]
  %s2 = inlined_call_operand.vmem [shape: f32[4,128,1], index: 2, kind: input, shape index: {}]
  %s3 = inlined_call_operand.vmem [shape: bf16[4,40,128], index: 3, kind: input, shape index: {}]
  %s4 = inlined_call_operand.vmem [shape: f32[4,32,1], index: 4, kind: input, shape index: {}]
  %s5 = inlined_call_operand.vmem [shape: f32[4,8,1], index: 5, kind: input, shape index: {}]
  %s6 = inlined_call_operand.hbm [shape: f32[32,128], index: 6, kind: output, shape index: {0}]
  %s7 = inlined_call_operand.hbm [shape: s32[4,128], index: 7, kind: output, shape index: {1}]
  %s8 = inlined_call_operand.hbm [shape: f32[1,4,128], index: 8, kind: output, shape index: {2}]
  %9 = xla_tuple %s6, %s7, %s8
  %s10 = sld [smem:[#allocation0]]
  $region50: #{tpu_custom_call.1} parent=0
    _
  %s12 = ssub.s32 1, %s10
  %s13 = scalar_select 0, %s12, %s10
  $region1: #{tpu_custom_call.1} parent=0
    #allocation2 [shape = 'u8[16384]{0}', space=vmem, size = 0x4000, scoped, tag = 'output window, operand 0, single buffered']
    #allocation3 [shape = 's32[1]{0}', space=sflag, size = 0x4, scoped, tag = 'scoped memory for tpu_custom_call.1']
    #allocation4 [shape = 'u8[2048]{0}', space=vmem, size = 0x800, scoped, tag = 'output window, operand 1, single buffered']
    #allocation5 [shape = 's32[1]{0}', space=sflag, size = 0x4, scoped, tag = 'scoped memory for tpu_custom_call.1']
    #allocation6 [shape = 'u8[2048]{0}', space=vmem, size = 0x800, scoped, tag = 'output window, operand 2, single buffered']
    %14 = vsyncpa [#allocation3], 0
    %15 = vsyncpa [#allocation5], 0
    // Predicated region
    $region2: #{tpu_custom_call.1} parent=1 // pred_check
      _
    $region3: #{tpu_custom_call.1} parent=1 // pred_check_branch
      %17 = sbr.rel (0) target = $region5
    $region4: #{tpu_custom_call.1} parent=1 // pred_region
      _
    $region5: #{tpu_custom_call.1} parent=1 // pred_fallthru
      _
    // Predicated region
    $region6: #{tpu_custom_call.1} parent=1 // pred_check
      _
    $region7: #{tpu_custom_call.1} parent=1 // pred_check_branch
      %19 = sbr.rel (0) target = $region9
    $region8: #{tpu_custom_call.1} parent=1 // pred_region
      _
    $region9: #{tpu_custom_call.1} parent=1 // pred_fallthru
      _
    // Predicated region
    $region10: #{tpu_custom_call.1} parent=1 // pred_check
      _
    $region11: #{tpu_custom_call.1} parent=1 // pred_check_branch
      %21 = sbr.rel (0) target = $region13
    $region12: #{tpu_custom_call.1} parent=1 // pred_region
      _
    $region13: #{tpu_custom_call.1} parent=1 // pred_fallthru
      _
    // Predicated region
    $region14: #{tpu_custom_call.1} parent=1 // pred_check
      _
    $region15: #{tpu_custom_call.1} parent=1 // pred_check_branch
      %23 = sbr.rel (0) target = $region17
    $region16: #{tpu_custom_call.1} parent=1 // pred_region
      _
    $region17: #{tpu_custom_call.1} parent=1 // pred_fallthru
      _
    // Predicated region
    $region18: #{tpu_custom_call.1} parent=1 // pred_check
      _
    $region19: #{tpu_custom_call.1} parent=1 // pred_check_branch
      %25 = sbr.rel (0) target = $region21
    $region20: #{tpu_custom_call.1} parent=1 // pred_region
      _
    $region21: #{tpu_custom_call.1} parent=1 // pred_fallthru
      _
    // Predicated region
    $region22: #{tpu_custom_call.1} parent=1 // pred_check
      _
    $region23: #{tpu_custom_call.1} parent=1 // pred_check_branch
      %27 = sbr.rel (0) target = $region25
    $region24: #{tpu_custom_call.1} parent=1 // pred_region
      _
    $region25: #{tpu_custom_call.1} parent=1 // pred_fallthru
      _
    %v29 = vld [vmem:[%s0] sm:$0xff]
    %v30 = vld [vmem:[%s0 + $0x8] sm:$0xff]
    %v31 = vld [vmem:[%s0 + $0x10] sm:$0xff]
    %v32 = vld [vmem:[%s0 + $0x18] sm:$0xff]
    %v33 = vlaneseq
    %v34 = vshrl.u32 %v33, 7
    %v35 = vadd.s32 %v34, 8
    %v36 = vadd.s32 %v34, 16
    %v37 = vadd.s32 %v34, 24
    %v38 = vadd.s32 %v34, 32
    %v39 = vadd.s32 %v34, 40
    %v40 = vadd.s32 %v34, 48
    %v41 = vadd.s32 %v34, 56
    %v42 = vadd.s32 %v34, 64
    %v43 = vadd.s32 %v34, 72
    %v44 = vadd.s32 %v34, 80
    %v45 = vadd.s32 %v34, 88
    %v46 = vadd.s32 %v34, 96
    %v47 = vadd.s32 %v34, 104
    %v48 = vadd.s32 %v34, 112
    %v49 = vadd.s32 %v34, 120
    %s50 = smul.u32 0, 128
    %v51 = vlaneseq
    %v52 = vand.u32 %v51, 127
    %v53 = vstv %s50
    %v54 = vadd.s32 %v53, %v52
    %vm55 = vcmp.lt.s32.totalorder %v54, 32
    %v56 = vsel %vm55, 1, 0
    %v57 = vcvt.s32.f32 %v56
    %v58 = vld [vmem:[%s1] sm:$0xf]
    %v59 = vld [vmem:[%s1 + $0x4] sm:$0xf]
    %v60 = vld [vmem:[%s1 + $0x8] sm:$0xf]
    %v61 = vld [vmem:[%s1 + $0xc] sm:$0xf]
    %v62 = vld [vmem:[%s1 + $0x10] sm:$0xf]
    %v63 = vld [vmem:[%s1 + $0x14] sm:$0xf]
    %v64 = vld [vmem:[%s1 + $0x18] sm:$0xf]
    %v65 = vld [vmem:[%s1 + $0x1c] sm:$0xf]
    %v66 = vld [vmem:[%s1 + $0x20] sm:$0xf]
    %v67 = vld [vmem:[%s1 + $0x24] sm:$0xf]
    %v68 = vld [vmem:[%s1 + $0x28] sm:$0xf]
    %v69 = vld [vmem:[%s1 + $0x2c] sm:$0xf]
    %v70 = vld [vmem:[%s1 + $0x30] sm:$0xf]
    %v71 = vld [vmem:[%s1 + $0x34] sm:$0xf]
    %v72 = vld [vmem:[%s1 + $0x38] sm:$0xf]
    %v73 = vld [vmem:[%s1 + $0x3c] sm:$0xf]
    %v74 = vld [vmem:[%s1 + $0x40] sm:$0xf]
    %v75 = vpack.c.bf16 %v30, %v29
    %v76 = vpack.c.bf16 %v32, %v31
    %v94 = vunpack.c.l.b16 %v58
    %v95 = vunpack.c.l.b16 %v59
    %v96 = vunpack.c.l.b16 %v60
    %v97 = vunpack.c.l.b16 %v61
    %v98 = vunpack.c.l.b16 %v62
    %v99 = vunpack.c.l.b16 %v63
    %v100 = vunpack.c.l.b16 %v64
    %v101 = vunpack.c.l.b16 %v65
    %v102 = vunpack.c.l.b16 %v66
    %v103 = vunpack.c.l.b16 %v67
    %v104 = vunpack.c.l.b16 %v68
    %v105 = vunpack.c.l.b16 %v69
    %v106 = vunpack.c.l.b16 %v70
    %v107 = vunpack.c.l.b16 %v71
    %v108 = vunpack.c.l.b16 %v72
    %v109 = vunpack.c.l.b16 %v73
    %v110 = vunpack.c.l.b16 %v74
    %v111 = vpack.c.b16 %v95, %v94
    %v112 = vpack.c.b16 %v97, %v96
    %v113 = vpack.c.b16 %v99, %v98
    %v114 = vpack.c.b16 %v101, %v100
    %v115 = vpack.c.b16 %v103, %v102
    %v116 = vpack.c.b16 %v105, %v104
    %v117 = vpack.c.b16 %v107, %v106
    %v118 = vpack.c.b16 %v109, %v108
    %v119 = vpack.c.b16 %v110, %v110
    %vm120 = vcmask 261120
    %v122 = vsel %vm120, %v111, 0
    %v125 = vsel %vm120, %v112, 0
    %v128 = vsel %vm120, %v113, 0
    %v131 = vsel %vm120, %v114, 0
    %v134 = vsel %vm120, %v115, 0
    %v137 = vsel %vm120, %v116, 0
    %v140 = vsel %vm120, %v117, 0
    %v143 = vsel %vm120, %v118, 0
    %v146 = vsel %vm120, %v119, 0
    %148 = vmatprep.subr.bf16.mxu0 0
    %149 = vmatpush1.bf16.msra.mxu0 %v75
    %150 = vmatprep.subr.bf16.mxu0 0
    %151 = vmatpush1.bf16.msra.mxu0 %v76
    %152 = vmatprep.subr.bf16.mxu0 0
    %153 = vmatpush1.bf16.msra.mxu0 0
    %154 = vmatprep.subr.bf16.mxu0 0
    %155 = vmatpush1.bf16.msra.mxu0 0
    %156 = vmatprep.subr.bf16.mxu0 0
    %157 = vmatpush1.bf16.msra.mxu0 0
    %158 = vmatprep.subr.bf16.mxu0 0
    %159 = vmatpush1.bf16.msra.mxu0 0
    %160 = vmatprep.subr.bf16.mxu0 0
    %161 = vmatpush1.bf16.msra.mxu0 0
    %162 = vmatprep.subr.bf16.mxu0 0
    %163 = vmatpush1.bf16.msra.mxu0 0
    %164 = vmatprep.subr.bf16.mxu0 0
    %165 = vmatpush1.bf16.msra.mxu0 0
    %166 = vmatprep.subr.bf16.mxu0 0
    %167 = vmatpush1.bf16.msra.mxu0 0
    %168 = vmatprep.subr.bf16.mxu0 0
    %169 = vmatpush1.bf16.msra.mxu0 0
    %170 = vmatprep.subr.bf16.mxu0 0
    %171 = vmatpush1.bf16.msra.mxu0 0
    %172 = vmatprep.subr.bf16.mxu0 0
    %173 = vmatpush1.bf16.msra.mxu0 0
    %174 = vmatprep.subr.bf16.mxu0 0
    %175 = vmatpush1.bf16.msra.mxu0 0
    %176 = vmatprep.subr.bf16.mxu0 0
    %177 = vmatpush1.bf16.msra.mxu0 0
    %178 = vmatprep.subr.bf16.mxu0 0
    %179 = vmatpush1.bf16.msra.mxu0 0
    %180 = vmatprep.mubr.bf16.mxu0 0
    %181 = vmatmul.mubr.bf16.gmra.mrb[0].mxu0 %v122
    %v182 = vpop.f32.mrb[0].mxu0
    %v183 = vadd.f32 0.0, %v182
    %v184 = vpop.f32.mrb[0].mxu0
    %v185 = vpop.f32.mrb[0].mxu0
    %v186 = vadd.f32 0.0, %v185
    %v187 = vpop.f32.mrb[0].mxu0
    %188 = vmatprep.mubr.bf16.mxu0 0
    %189 = vmatmul.mubr.bf16.gmra.mrb[0].mxu0 %v125
    %v190 = vpop.f32.mrb[0].mxu0
    %v191 = vadd.f32 0.0, %v190
    %v192 = vpop.f32.mrb[0].mxu0
    %v193 = vpop.f32.mrb[0].mxu0
    %v194 = vadd.f32 0.0, %v193
    %v195 = vpop.f32.mrb[0].mxu0
    %196 = vmatprep.mubr.bf16.mxu0 0
    %197 = vmatmul.mubr.bf16.gmra.mrb[0].mxu0 %v128
    %v198 = vpop.f32.mrb[0].mxu0
    %v199 = vadd.f32 0.0, %v198
    %v200 = vpop.f32.mrb[0].mxu0
    %v201 = vpop.f32.mrb[0].mxu0
    %v202 = vadd.f32 0.0, %v201
    %v203 = vpop.f32.mrb[0].mxu0
    %204 = vmatprep.mubr.bf16.mxu0 0
    %205 = vmatmul.mubr.bf16.gmra.mrb[0].mxu0 %v131
    %v206 = vpop.f32.mrb[0].mxu0
    %v207 = vadd.f32 0.0, %v206
    %v208 = vpop.f32.mrb[0].mxu0
    %v209 = vpop.f32.mrb[0].mxu0
    %v210 = vadd.f32 0.0, %v209
    %v211 = vpop.f32.mrb[0].mxu0
    %212 = vmatprep.mubr.bf16.mxu0 0
    %213 = vmatmul.mubr.bf16.gmra.mrb[0].mxu0 %v134
    %v214 = vpop.f32.mrb[0].mxu0
    %v215 = vadd.f32 0.0, %v214
    %v216 = vpop.f32.mrb[0].mxu0
    %v217 = vpop.f32.mrb[0].mxu0
    %v218 = vadd.f32 0.0, %v217
    %v219 = vpop.f32.mrb[0].mxu0
    %220 = vmatprep.mubr.bf16.mxu0 0
    %221 = vmatmul.mubr.bf16.gmra.mrb[0].mxu0 %v137
    %v222 = vpop.f32.mrb[0].mxu0
    %v223 = vadd.f32 0.0, %v222
    %v224 = vpop.f32.mrb[0].mxu0
    %v225 = vpop.f32.mrb[0].mxu0
    %v226 = vadd.f32 0.0, %v225
    %v227 = vpop.f32.mrb[0].mxu0
    %228 = vmatprep.mubr.bf16.mxu0 0
    %229 = vmatmul.mubr.bf16.gmra.mrb[0].mxu0 %v140
    %v230 = vpop.f32.mrb[0].mxu0
    %v231 = vadd.f32 0.0, %v230
    %v232 = vpop.f32.mrb[0].mxu0
    %v233 = vpop.f32.mrb[0].mxu0
    %v234 = vadd.f32 0.0, %v233
    %v235 = vpop.f32.mrb[0].mxu0
    %236 = vmatprep.mubr.bf16.mxu0 0
    %237 = vmatmul.mubr.bf16.gmra.mrb[0].mxu0 %v143
    %v238 = vpop.f32.mrb[0].mxu0
    %v239 = vadd.f32 0.0, %v238
    %v240 = vpop.f32.mrb[0].mxu0
    %v241 = vpop.f32.mrb[0].mxu0
    %v242 = vadd.f32 0.0, %v241
    %v243 = vpop.f32.mrb[0].mxu0
    %244 = vmatprep.mubr.bf16.mxu0 0
    %245 = vmatmul.mubr.bf16.gmra.mrb[0].mxu0 %v146
    %v246 = vpop.f32.mrb[0].mxu0
    %v247 = vadd.f32 0.0, %v246
    %v248 = vpop.f32.mrb[0].mxu0
    %v249 = vpop.f32.mrb[0].mxu0
    %v250 = vpop.f32.mrb[0].mxu0
    %251 = vdwg.mxu0
    %v252 = vld [vmem:[%s2] sm:$0xff]
    %v253 = vld [vmem:[%s2 + $0x8] sm:$0xff]
    %v254 = vld [vmem:[%s2 + $0x10] sm:$0xff]
    %v255 = vld [vmem:[%s2 + $0x18] sm:$0xff]
    %v256 = vld [vmem:[%s2 + $0x20] sm:$0xff]
    %v257 = vld [vmem:[%s2 + $0x28] sm:$0xff]
    %v258 = vld [vmem:[%s2 + $0x30] sm:$0xff]
    %v259 = vld [vmem:[%s2 + $0x38] sm:$0xff]
    %v260 = vld [vmem:[%s2 + $0x40] sm:$0xff]
    %v261 = vld [vmem:[%s2 + $0x48] sm:$0xff]
    %v262 = vld [vmem:[%s2 + $0x50] sm:$0xff]
    %v263 = vld [vmem:[%s2 + $0x58] sm:$0xff]
    %v264 = vld [vmem:[%s2 + $0x60] sm:$0xff]
    %v265 = vld [vmem:[%s2 + $0x68] sm:$0xff]
    %v266 = vld [vmem:[%s2 + $0x70] sm:$0xff]
    %v267 = vld [vmem:[%s2 + $0x78] sm:$0xff]
    %269 = vset.pattern.permute.xlu0 0
    %270 = vperm.xlu0 %269, %v252
    %v271 = vpop.permute.xlu0 %270
    %274 = vset.pattern.permute.xlu0 0
    %275 = vperm.xlu0 %274, %v253
    %v276 = vpop.permute.xlu0 %275
    %279 = vset.pattern.permute.xlu0 0
    %280 = vperm.xlu0 %279, %v254
    %v281 = vpop.permute.xlu0 %280
    %284 = vset.pattern.permute.xlu0 0
    %285 = vperm.xlu0 %284, %v255
    %v286 = vpop.permute.xlu0 %285
    %289 = vset.pattern.permute.xlu0 0
    %290 = vperm.xlu0 %289, %v256
    %v291 = vpop.permute.xlu0 %290
    %294 = vset.pattern.permute.xlu0 0
    %295 = vperm.xlu0 %294, %v257
    %v296 = vpop.permute.xlu0 %295
    %299 = vset.pattern.permute.xlu0 0
    %300 = vperm.xlu0 %299, %v258
    %v301 = vpop.permute.xlu0 %300
    %304 = vset.pattern.permute.xlu0 0
    %305 = vperm.xlu0 %304, %v259
    %v306 = vpop.permute.xlu0 %305
    %309 = vset.pattern.permute.xlu0 0
    %310 = vperm.xlu0 %309, %v260
    %v311 = vpop.permute.xlu0 %310
    %314 = vset.pattern.permute.xlu0 0
    %315 = vperm.xlu0 %314, %v261
    %v316 = vpop.permute.xlu0 %315
    %319 = vset.pattern.permute.xlu0 0
    %320 = vperm.xlu0 %319, %v262
    %v321 = vpop.permute.xlu0 %320
    %324 = vset.pattern.permute.xlu0 0
    %325 = vperm.xlu0 %324, %v263
    %v326 = vpop.permute.xlu0 %325
    %329 = vset.pattern.permute.xlu0 0
    %330 = vperm.xlu0 %329, %v264
    %v331 = vpop.permute.xlu0 %330
    %334 = vset.pattern.permute.xlu0 0
    %335 = vperm.xlu0 %334, %v265
    %v336 = vpop.permute.xlu0 %335
    %339 = vset.pattern.permute.xlu0 0
    %340 = vperm.xlu0 %339, %v266
    %v341 = vpop.permute.xlu0 %340
    %344 = vset.pattern.permute.xlu0 0
    %345 = vperm.xlu0 %344, %v267
    %v346 = vpop.permute.xlu0 %345
    %v348 = vsub.f32 %v271, %v183
    %v349 = vsub.f32 %v276, %v186
    %v350 = vsub.f32 %v281, %v191
    %v351 = vsub.f32 %v286, %v194
    %v352 = vsub.f32 %v291, %v199
    %v353 = vsub.f32 %v296, %v202
    %v354 = vsub.f32 %v301, %v207
    %v355 = vsub.f32 %v306, %v210
    %v356 = vsub.f32 %v311, %v215
    %v357 = vsub.f32 %v316, %v218
    %v358 = vsub.f32 %v321, %v223
    %v359 = vsub.f32 %v326, %v226
    %v360 = vsub.f32 %v331, %v231
    %v361 = vsub.f32 %v336, %v234
    %v362 = vsub.f32 %v341, %v239
    %v363 = vsub.f32 %v346, %v242
    %v364 = vld [vmem:[%s5] sm:$0xff]
    %366 = vset.pattern.permute.xlu0 0
    %367 = vperm.xlu0 %366, %v364
    %v368 = vpop.permute.xlu0 %367
    %v370 = vadd.f32 %v247, %v368
    %v371 = vmin.f32 %v348, %v352
    %v372 = vmin.f32 %v349, %v353
    %v373 = vmin.f32 %v350, %v354
    %v374 = vmin.f32 %v351, %v355
    %v375 = vmin.f32 %v371, %v356
    %v376 = vmin.f32 %v372, %v357
    %v377 = vmin.f32 %v373, %v358
    %v378 = vmin.f32 %v374, %v359
    %v379 = vmin.f32 %v375, %v360
    %v380 = vmin.f32 %v376, %v361
    %v381 = vmin.f32 %v377, %v362
    %v382 = vmin.f32 %v378, %v363
    %v383 = vmin.f32 %v379, %v380
    %v384 = vmin.f32 %v381, %v382
    %v385 = vmin.f32 %v383, %v384
    %v386 = vrot.slane %v385, 4
    %v387 = vmin.f32 %v385, %v386
    %v388 = vrot.slane %v387, 2
    %v389 = vmin.f32 %v387, %v388
    %v390 = vrot.slane %v389, 1
    %v391 = vmin.f32 %v389, %v390
    %vm392 = vcmp.le.f32.partialorder %v348, %v391
    %vm393 = vcmp.le.f32.partialorder %v349, %v391
    %vm394 = vcmp.le.f32.partialorder %v350, %v391
    %vm395 = vcmp.le.f32.partialorder %v351, %v391
    %vm396 = vcmp.le.f32.partialorder %v352, %v391
    %vm397 = vcmp.le.f32.partialorder %v353, %v391
    %vm398 = vcmp.le.f32.partialorder %v354, %v391
    %vm399 = vcmp.le.f32.partialorder %v355, %v391
    %vm400 = vcmp.le.f32.partialorder %v356, %v391
    %vm401 = vcmp.le.f32.partialorder %v357, %v391
    %vm402 = vcmp.le.f32.partialorder %v358, %v391
    %vm403 = vcmp.le.f32.partialorder %v359, %v391
    %vm404 = vcmp.le.f32.partialorder %v360, %v391
    %vm405 = vcmp.le.f32.partialorder %v361, %v391
    %vm406 = vcmp.le.f32.partialorder %v362, %v391
    %vm407 = vcmp.le.f32.partialorder %v363, %v391
    %v408 = vsel %vm392, %v34, 128
    %v409 = vsel %vm393, %v35, 128
    %v410 = vsel %vm394, %v36, 128
    %v411 = vsel %vm395, %v37, 128
    %v412 = vsel %vm396, %v38, 128
    %v413 = vsel %vm397, %v39, 128
    %v414 = vsel %vm398, %v40, 128
    %v415 = vsel %vm399, %v41, 128
    %v416 = vsel %vm400, %v42, 128
    %v417 = vsel %vm401, %v43, 128
    %v418 = vsel %vm402, %v44, 128
    %v419 = vsel %vm403, %v45, 128
    %v420 = vsel %vm404, %v46, 128
    %v421 = vsel %vm405, %v47, 128
    %v422 = vsel %vm406, %v48, 128
    %v423 = vsel %vm407, %v49, 128
    %vm424 = vcmp.lt.s32.totalorder %v408, %v412
    %v425 = vsel %vm424, %v408, %v412
    %vm426 = vcmp.lt.s32.totalorder %v409, %v413
    %v427 = vsel %vm426, %v409, %v413
    %vm428 = vcmp.lt.s32.totalorder %v410, %v414
    %v429 = vsel %vm428, %v410, %v414
    %vm430 = vcmp.lt.s32.totalorder %v411, %v415
    %v431 = vsel %vm430, %v411, %v415
    %vm432 = vcmp.lt.s32.totalorder %v425, %v416
    %v433 = vsel %vm432, %v425, %v416
    %vm434 = vcmp.lt.s32.totalorder %v427, %v417
    %v435 = vsel %vm434, %v427, %v417
    %vm436 = vcmp.lt.s32.totalorder %v429, %v418
    %v437 = vsel %vm436, %v429, %v418
    %vm438 = vcmp.lt.s32.totalorder %v431, %v419
    %v439 = vsel %vm438, %v431, %v419
    %vm440 = vcmp.lt.s32.totalorder %v433, %v420
    %v441 = vsel %vm440, %v433, %v420
    %vm442 = vcmp.lt.s32.totalorder %v435, %v421
    %v443 = vsel %vm442, %v435, %v421
    %vm444 = vcmp.lt.s32.totalorder %v437, %v422
    %v445 = vsel %vm444, %v437, %v422
    %vm446 = vcmp.lt.s32.totalorder %v439, %v423
    %v447 = vsel %vm446, %v439, %v423
    %vm448 = vcmp.lt.s32.totalorder %v441, %v443
    %v449 = vsel %vm448, %v441, %v443
    %vm450 = vcmp.lt.s32.totalorder %v445, %v447
    %v451 = vsel %vm450, %v445, %v447
    %vm452 = vcmp.lt.s32.totalorder %v449, %v451
    %v453 = vsel %vm452, %v449, %v451
    %v454 = vrot.slane %v453, 4
    %vm455 = vcmp.lt.s32.totalorder %v453, %v454
    %v456 = vsel %vm455, %v453, %v454
    %v457 = vrot.slane %v456, 2
    %vm458 = vcmp.lt.s32.totalorder %v456, %v457
    %v459 = vsel %vm458, %v456, %v457
    %v460 = vrot.slane %v459, 1
    %vm461 = vcmp.lt.s32.totalorder %v459, %v460
    %v462 = vsel %vm461, %v459, %v460
    %vm463 = vcmp.eq.s32.totalorder %v34, %v462
    %vm464 = vcmp.eq.s32.totalorder %v35, %v462
    %vm465 = vcmp.eq.s32.totalorder %v36, %v462
    %vm466 = vcmp.eq.s32.totalorder %v37, %v462
    %vm467 = vcmp.eq.s32.totalorder %v38, %v462
    %vm468 = vcmp.eq.s32.totalorder %v39, %v462
    %vm469 = vcmp.eq.s32.totalorder %v40, %v462
    %vm470 = vcmp.eq.s32.totalorder %v41, %v462
    %vm471 = vcmp.eq.s32.totalorder %v42, %v462
    %vm472 = vcmp.eq.s32.totalorder %v43, %v462
    %vm473 = vcmp.eq.s32.totalorder %v44, %v462
    %vm474 = vcmp.eq.s32.totalorder %v45, %v462
    %vm475 = vcmp.eq.s32.totalorder %v46, %v462
    %vm476 = vcmp.eq.s32.totalorder %v47, %v462
    %vm477 = vcmp.eq.s32.totalorder %v48, %v462
    %vm478 = vcmp.eq.s32.totalorder %v49, %v462
    %v479 = vsel %vm463, 1, 0
    %v480 = vsel %vm464, 1, 0
    %v481 = vsel %vm465, 1, 0
    %v482 = vsel %vm466, 1, 0
    %v483 = vsel %vm467, 1, 0
    %v484 = vsel %vm468, 1, 0
    %v485 = vsel %vm469, 1, 0
    %v486 = vsel %vm470, 1, 0
    %v487 = vsel %vm471, 1, 0
    %v488 = vsel %vm472, 1, 0
    %v489 = vsel %vm473, 1, 0
    %v490 = vsel %vm474, 1, 0
    %v491 = vsel %vm475, 1, 0
    %v492 = vsel %vm476, 1, 0
    %v493 = vsel %vm477, 1, 0
    %v494 = vsel %vm478, 1, 0
    %v495 = vcvt.s32.f32 %v479
    %v496 = vcvt.s32.f32 %v480
    %v497 = vcvt.s32.f32 %v481
    %v498 = vcvt.s32.f32 %v482
    %v499 = vcvt.s32.f32 %v483
    %v500 = vcvt.s32.f32 %v484
    %v501 = vcvt.s32.f32 %v485
    %v502 = vcvt.s32.f32 %v486
    %v503 = vcvt.s32.f32 %v487
    %v504 = vcvt.s32.f32 %v488
    %v505 = vcvt.s32.f32 %v489
    %v506 = vcvt.s32.f32 %v490
    %v507 = vcvt.s32.f32 %v491
    %v508 = vcvt.s32.f32 %v492
    %v509 = vcvt.s32.f32 %v493
    %v510 = vcvt.s32.f32 %v494
    %v511 = vpack.c.bf16 %v496, %v495
    %v512 = vpack.c.bf16 %v498, %v497
    %v513 = vpack.c.bf16 %v500, %v499
    %v514 = vpack.c.bf16 %v502, %v501
    %v515 = vpack.c.bf16 %v504, %v503
    %v516 = vpack.c.bf16 %v506, %v505
    %v517 = vpack.c.bf16 %v508, %v507
    %v518 = vpack.c.bf16 %v510, %v509
    %v519 = vld [vmem:[%s3] sm:$0xf]
    %v520 = vld [vmem:[%s3 + $0x4] sm:$0xf]
    %v521 = vld [vmem:[%s3 + $0x8] sm:$0xf]
    %v522 = vld [vmem:[%s3 + $0xc] sm:$0xf]
    %v523 = vld [vmem:[%s3 + $0x10] sm:$0xf]
    %v529 = vunpack.c.l.b16 %v519
    %v530 = vunpack.c.l.b16 %v520
    %v531 = vunpack.c.l.b16 %v521
    %v532 = vunpack.c.l.b16 %v522
    %v533 = vunpack.c.l.b16 %v523
    %v534 = vpack.c.b16 %v530, %v529
    %v535 = vpack.c.b16 %v532, %v531
    %v536 = vpack.c.b16 %v533, %v533
    %540 = vmatprep.subr.bf16.mxu0 0
    %541 = vmatpush1.bf16.msra.mxu0 %v511
    %542 = vmatprep.subr.bf16.mxu0 0
    %543 = vmatpush1.bf16.msra.mxu0 %v512
    %544 = vmatprep.subr.bf16.mxu0 0
    %545 = vmatpush1.bf16.msra.mxu0 %v513
    %546 = vmatprep.subr.bf16.mxu0 0
    %547 = vmatpush1.bf16.msra.mxu0 %v514
    %548 = vmatprep.subr.bf16.mxu0 0
    %549 = vmatpush1.bf16.msra.mxu0 %v515
    %550 = vmatprep.subr.bf16.mxu0 0
    %551 = vmatpush1.bf16.msra.mxu0 %v516
    %552 = vmatprep.subr.bf16.mxu0 0
    %553 = vmatpush1.bf16.msra.mxu0 %v517
    %554 = vmatprep.subr.bf16.mxu0 0
    %555 = vmatpush1.bf16.msra.mxu0 %v518
    %556 = vmatprep.subr.bf16.mxu0 0
    %557 = vmatpush1.bf16.msra.mxu0 0
    %558 = vmatprep.subr.bf16.mxu0 0
    %559 = vmatpush1.bf16.msra.mxu0 0
    %560 = vmatprep.subr.bf16.mxu0 0
    %561 = vmatpush1.bf16.msra.mxu0 0
    %562 = vmatprep.subr.bf16.mxu0 0
    %563 = vmatpush1.bf16.msra.mxu0 0
    %564 = vmatprep.subr.bf16.mxu0 0
    %565 = vmatpush1.bf16.msra.mxu0 0
    %566 = vmatprep.subr.bf16.mxu0 0
    %567 = vmatpush1.bf16.msra.mxu0 0
    %568 = vmatprep.subr.bf16.mxu0 0
    %569 = vmatpush1.bf16.msra.mxu0 0
    %570 = vmatprep.subr.bf16.mxu0 0
    %571 = vmatpush1.bf16.msra.mxu0 0
    %572 = vmatprep.mubr.bf16.mxu0 0
    %573 = vmatmul.mubr.bf16.gmra.mrb[0].mxu0 %v534
    %v574 = vpop.f32.mrb[0].mxu0
    %v575 = vadd.f32 0.0, %v574
    %v576 = vpop.f32.mrb[0].mxu0
    %v577 = vpop.f32.mrb[0].mxu0
    %v578 = vadd.f32 0.0, %v577
    %v579 = vpop.f32.mrb[0].mxu0
    %580 = vmatprep.mubr.bf16.mxu0 0
    %581 = vmatmul.mubr.bf16.gmra.mrb[0].mxu0 %v535
    %v582 = vpop.f32.mrb[0].mxu0
    %v583 = vadd.f32 0.0, %v582
    %v584 = vpop.f32.mrb[0].mxu0
    %v585 = vpop.f32.mrb[0].mxu0
    %v586 = vadd.f32 0.0, %v585
    %v587 = vpop.f32.mrb[0].mxu0
    %588 = vmatprep.mubr.bf16.mxu0 0
    %589 = vmatmul.mubr.bf16.gmra.mrb[0].mxu0 %v536
    %v590 = vpop.f32.mrb[0].mxu0
    %v591 = vadd.f32 0.0, %v590
    %v592 = vpop.f32.mrb[0].mxu0
    %v593 = vpop.f32.mrb[0].mxu0
    %v594 = vpop.f32.mrb[0].mxu0
    %595 = vdwg.mxu0
    %v596 = vld [vmem:[%s4] sm:$0xff]
    %v597 = vld [vmem:[%s4 + $0x8] sm:$0xff]
    %v598 = vld [vmem:[%s4 + $0x10] sm:$0xff]
    %v599 = vld [vmem:[%s4 + $0x18] sm:$0xff]
    %601 = vset.pattern.permute.xlu0 0
    %602 = vperm.xlu0 %601, %v596
    %v603 = vpop.permute.xlu0 %602
    %606 = vset.pattern.permute.xlu0 0
    %607 = vperm.xlu0 %606, %v597
    %v608 = vpop.permute.xlu0 %607
    %611 = vset.pattern.permute.xlu0 0
    %612 = vperm.xlu0 %611, %v598
    %v613 = vpop.permute.xlu0 %612
    %616 = vset.pattern.permute.xlu0 0
    %617 = vperm.xlu0 %616, %v599
    %v618 = vpop.permute.xlu0 %617
    %v620 = vadd.f32 %v575, %v603
    %v621 = vadd.f32 %v578, %v608
    %v622 = vadd.f32 %v583, %v613
    %v623 = vadd.f32 %v586, %v618
    %v624 = vadd.f32 %v620, 0.0
    %v625 = vadd.f32 %v621, 0.0
    %v626 = vadd.f32 %v622, 0.0
    %v627 = vadd.f32 %v623, 0.0
    %v628 = vsub.f32 %v29, %v620
    %v629 = vsub.f32 %v30, %v621
    %v630 = vsub.f32 %v31, %v622
    %v631 = vsub.f32 %v32, %v623
    %632 = vst [vmem:[#allocation4] sm:$0x1] %v462
    %v633 = vsub.f32 %v591, %v370
    %v634 = vmul.f32 %v633, %v57
    %v635 = vmul.f32 %v634, %v634
    %636 = vadd.xlane.f32.xlu0 %v635
    %v637 = vpop.xlane.xlu0 %636
    %v638 = vrot.slane %v637, 4
    %v639 = vadd.f32 %v637, %v638
    %v640 = vrot.slane %v639, 2
    %v641 = vadd.f32 %v639, %v640
    %v642 = vrot.slane %v641, 1
    %v643 = vadd.f32 %v641, %v642
    %s644 = vtos %v643
    %v645 = vstv %s644
    %v646 = vadd.f32 %v645, 0.0
    %647 = vst [vmem:[#allocation6] sm:$0x1] %v646
    %s648 = scalar_lea.vmem %s1, 68
    %v649 = vld [vmem:[%s648] sm:$0xf]
    %v650 = vld [vmem:[%s648 + $0x4] sm:$0xf]
    %v651 = vld [vmem:[%s648 + $0x8] sm:$0xf]
    %v652 = vld [vmem:[%s648 + $0xc] sm:$0xf]
    %v653 = vld [vmem:[%s648 + $0x10] sm:$0xf]
    %v654 = vld [vmem:[%s648 + $0x14] sm:$0xf]
    %v655 = vld [vmem:[%s648 + $0x18] sm:$0xf]
    %v656 = vld [vmem:[%s648 + $0x1c] sm:$0xf]
    %v657 = vld [vmem:[%s648 + $0x20] sm:$0xf]
    %v658 = vld [vmem:[%s648 + $0x24] sm:$0xf]
    %v659 = vld [vmem:[%s648 + $0x28] sm:$0xf]
    %v660 = vld [vmem:[%s648 + $0x2c] sm:$0xf]
    %v661 = vld [vmem:[%s648 + $0x30] sm:$0xf]
    %v662 = vld [vmem:[%s648 + $0x34] sm:$0xf]
    %v663 = vld [vmem:[%s648 + $0x38] sm:$0xf]
    %v664 = vld [vmem:[%s648 + $0x3c] sm:$0xf]
    %v665 = vld [vmem:[%s648 + $0x40] sm:$0xf]
    %v666 = vpack.c.bf16 %v629, %v628
    %v667 = vpack.c.bf16 %v631, %v630
    %v685 = vunpack.c.l.b16 %v649
    %v686 = vunpack.c.l.b16 %v650
    %v687 = vunpack.c.l.b16 %v651
    %v688 = vunpack.c.l.b16 %v652
    %v689 = vunpack.c.l.b16 %v653
    %v690 = vunpack.c.l.b16 %v654
    %v691 = vunpack.c.l.b16 %v655
    %v692 = vunpack.c.l.b16 %v656
    %v693 = vunpack.c.l.b16 %v657
    %v694 = vunpack.c.l.b16 %v658
    %v695 = vunpack.c.l.b16 %v659
    %v696 = vunpack.c.l.b16 %v660
    %v697 = vunpack.c.l.b16 %v661
    %v698 = vunpack.c.l.b16 %v662
    %v699 = vunpack.c.l.b16 %v663
    %v700 = vunpack.c.l.b16 %v664
    %v701 = vunpack.c.l.b16 %v665
    %v702 = vpack.c.b16 %v686, %v685
    %v703 = vpack.c.b16 %v688, %v687
    %v704 = vpack.c.b16 %v690, %v689
    %v705 = vpack.c.b16 %v692, %v691
    %v706 = vpack.c.b16 %v694, %v693
    %v707 = vpack.c.b16 %v696, %v695
    %v708 = vpack.c.b16 %v698, %v697
    %v709 = vpack.c.b16 %v700, %v699
    %v710 = vpack.c.b16 %v701, %v701
    %v712 = vsel %vm120, %v702, 0
    %v715 = vsel %vm120, %v703, 0
    %v718 = vsel %vm120, %v704, 0
    %v721 = vsel %vm120, %v705, 0
    %v724 = vsel %vm120, %v706, 0
    %v727 = vsel %vm120, %v707, 0
    %v730 = vsel %vm120, %v708, 0
    %v733 = vsel %vm120, %v709, 0
    %v736 = vsel %vm120, %v710, 0
    %738 = vmatprep.subr.bf16.mxu0 0
    %739 = vmatpush1.bf16.msra.mxu0 %v666
    %740 = vmatprep.subr.bf16.mxu0 0
    %741 = vmatpush1.bf16.msra.mxu0 %v667
    %742 = vmatprep.subr.bf16.mxu0 0
    %743 = vmatpush1.bf16.msra.mxu0 0
    %744 = vmatprep.subr.bf16.mxu0 0
    %745 = vmatpush1.bf16.msra.mxu0 0
    %746 = vmatprep.subr.bf16.mxu0 0
    %747 = vmatpush1.bf16.msra.mxu0 0
    %748 = vmatprep.subr.bf16.mxu0 0
    %749 = vmatpush1.bf16.msra.mxu0 0
    %750 = vmatprep.subr.bf16.mxu0 0
    %751 = vmatpush1.bf16.msra.mxu0 0
    %752 = vmatprep.subr.bf16.mxu0 0
    %753 = vmatpush1.bf16.msra.mxu0 0
    %754 = vmatprep.subr.bf16.mxu0 0
    %755 = vmatpush1.bf16.msra.mxu0 0
    %756 = vmatprep.subr.bf16.mxu0 0
    %757 = vmatpush1.bf16.msra.mxu0 0
    %758 = vmatprep.subr.bf16.mxu0 0
    %759 = vmatpush1.bf16.msra.mxu0 0
    %760 = vmatprep.subr.bf16.mxu0 0
    %761 = vmatpush1.bf16.msra.mxu0 0
    %762 = vmatprep.subr.bf16.mxu0 0
    %763 = vmatpush1.bf16.msra.mxu0 0
    %764 = vmatprep.subr.bf16.mxu0 0
    %765 = vmatpush1.bf16.msra.mxu0 0
    %766 = vmatprep.subr.bf16.mxu0 0
    %767 = vmatpush1.bf16.msra.mxu0 0
    %768 = vmatprep.subr.bf16.mxu0 0
    %769 = vmatpush1.bf16.msra.mxu0 0
    %770 = vmatprep.mubr.bf16.mxu0 0
    %771 = vmatmul.mubr.bf16.gmra.mrb[0].mxu0 %v712
    %v772 = vpop.f32.mrb[0].mxu0
    %v773 = vadd.f32 0.0, %v772
    %v774 = vpop.f32.mrb[0].mxu0
    %v775 = vpop.f32.mrb[0].mxu0
    %v776 = vadd.f32 0.0, %v775
    %v777 = vpop.f32.mrb[0].mxu0
    %778 = vmatprep.mubr.bf16.mxu0 0
    %779 = vmatmul.mubr.bf16.gmra.mrb[0].mxu0 %v715
    %v780 = vpop.f32.mrb[0].mxu0
    %v781 = vadd.f32 0.0, %v780
    %v782 = vpop.f32.mrb[0].mxu0
    %v783 = vpop.f32.mrb[0].mxu0
    %v784 = vadd.f32 0.0, %v783
    %v785 = vpop.f32.mrb[0].mxu0
    %786 = vmatprep.mubr.bf16.mxu0 0
    %787 = vmatmul.mubr.bf16.gmra.mrb[0].mxu0 %v718
    %v788 = vpop.f32.mrb[0].mxu0
    %v789 = vadd.f32 0.0, %v788
    %v790 = vpop.f32.mrb[0].mxu0
    %v791 = vpop.f32.mrb[0].mxu0
    %v792 = vadd.f32 0.0, %v791
    %v793 = vpop.f32.mrb[0].mxu0
    %794 = vmatprep.mubr.bf16.mxu0 0
    %795 = vmatmul.mubr.bf16.gmra.mrb[0].mxu0 %v721
    %v796 = vpop.f32.mrb[0].mxu0
    %v797 = vadd.f32 0.0, %v796
    %v798 = vpop.f32.mrb[0].mxu0
    %v799 = vpop.f32.mrb[0].mxu0
    %v800 = vadd.f32 0.0, %v799
    %v801 = vpop.f32.mrb[0].mxu0
    %802 = vmatprep.mubr.bf16.mxu0 0
    %803 = vmatmul.mubr.bf16.gmra.mrb[0].mxu0 %v724
    %v804 = vpop.f32.mrb[0].mxu0
    %v805 = vadd.f32 0.0, %v804
    %v806 = vpop.f32.mrb[0].mxu0
    %v807 = vpop.f32.mrb[0].mxu0
    %v808 = vadd.f32 0.0, %v807
    %v809 = vpop.f32.mrb[0].mxu0
    %810 = vmatprep.mubr.bf16.mxu0 0
    %811 = vmatmul.mubr.bf16.gmra.mrb[0].mxu0 %v727
    %v812 = vpop.f32.mrb[0].mxu0
    %v813 = vadd.f32 0.0, %v812
    %v814 = vpop.f32.mrb[0].mxu0
    %v815 = vpop.f32.mrb[0].mxu0
    %v816 = vadd.f32 0.0, %v815
    %v817 = vpop.f32.mrb[0].mxu0
    %818 = vmatprep.mubr.bf16.mxu0 0
    %819 = vmatmul.mubr.bf16.gmra.mrb[0].mxu0 %v730
    %v820 = vpop.f32.mrb[0].mxu0
    %v821 = vadd.f32 0.0, %v820
    %v822 = vpop.f32.mrb[0].mxu0
    %v823 = vpop.f32.mrb[0].mxu0
    %v824 = vadd.f32 0.0, %v823
    %v825 = vpop.f32.mrb[0].mxu0
    %826 = vmatprep.mubr.bf16.mxu0 0
    %827 = vmatmul.mubr.bf16.gmra.mrb[0].mxu0 %v733
    %v828 = vpop.f32.mrb[0].mxu0
    %v829 = vadd.f32 0.0, %v828
    %v830 = vpop.f32.mrb[0].mxu0
    %v831 = vpop.f32.mrb[0].mxu0
    %v832 = vadd.f32 0.0, %v831
    %v833 = vpop.f32.mrb[0].mxu0
    %834 = vmatprep.mubr.bf16.mxu0 0
    %835 = vmatmul.mubr.bf16.gmra.mrb[0].mxu0 %v736
    %v836 = vpop.f32.mrb[0].mxu0
    %v837 = vadd.f32 0.0, %v836
    %v838 = vpop.f32.mrb[0].mxu0
    %v839 = vpop.f32.mrb[0].mxu0
    %v840 = vpop.f32.mrb[0].mxu0
    %841 = vdwg.mxu0
    %s842 = scalar_lea.vmem %s2, 128
    %v843 = vld [vmem:[%s842] sm:$0xff]
    %v844 = vld [vmem:[%s842 + $0x8] sm:$0xff]
    %v845 = vld [vmem:[%s842 + $0x10] sm:$0xff]
    %v846 = vld [vmem:[%s842 + $0x18] sm:$0xff]
    %v847 = vld [vmem:[%s842 + $0x20] sm:$0xff]
    %v848 = vld [vmem:[%s842 + $0x28] sm:$0xff]
    %v849 = vld [vmem:[%s842 + $0x30] sm:$0xff]
    %v850 = vld [vmem:[%s842 + $0x38] sm:$0xff]
    %v851 = vld [vmem:[%s842 + $0x40] sm:$0xff]
    %v852 = vld [vmem:[%s842 + $0x48] sm:$0xff]
    %v853 = vld [vmem:[%s842 + $0x50] sm:$0xff]
    %v854 = vld [vmem:[%s842 + $0x58] sm:$0xff]
    %v855 = vld [vmem:[%s842 + $0x60] sm:$0xff]
    %v856 = vld [vmem:[%s842 + $0x68] sm:$0xff]
    %v857 = vld [vmem:[%s842 + $0x70] sm:$0xff]
    %v858 = vld [vmem:[%s842 + $0x78] sm:$0xff]
    %860 = vset.pattern.permute.xlu0 0
    %861 = vperm.xlu0 %860, %v843
    %v862 = vpop.permute.xlu0 %861
    %865 = vset.pattern.permute.xlu0 0
    %866 = vperm.xlu0 %865, %v844
    %v867 = vpop.permute.xlu0 %866
    %870 = vset.pattern.permute.xlu0 0
    %871 = vperm.xlu0 %870, %v845
    %v872 = vpop.permute.xlu0 %871
    %875 = vset.pattern.permute.xlu0 0
    %876 = vperm.xlu0 %875, %v846
    %v877 = vpop.permute.xlu0 %876
    %880 = vset.pattern.permute.xlu0 0
    %881 = vperm.xlu0 %880, %v847
    %v882 = vpop.permute.xlu0 %881
    %885 = vset.pattern.permute.xlu0 0
    %886 = vperm.xlu0 %885, %v848
    %v887 = vpop.permute.xlu0 %886
    %890 = vset.pattern.permute.xlu0 0
    %891 = vperm.xlu0 %890, %v849
    %v892 = vpop.permute.xlu0 %891
    %895 = vset.pattern.permute.xlu0 0
    %896 = vperm.xlu0 %895, %v850
    %v897 = vpop.permute.xlu0 %896
    %900 = vset.pattern.permute.xlu0 0
    %901 = vperm.xlu0 %900, %v851
    %v902 = vpop.permute.xlu0 %901
    %905 = vset.pattern.permute.xlu0 0
    %906 = vperm.xlu0 %905, %v852
    %v907 = vpop.permute.xlu0 %906
    %910 = vset.pattern.permute.xlu0 0
    %911 = vperm.xlu0 %910, %v853
    %v912 = vpop.permute.xlu0 %911
    %915 = vset.pattern.permute.xlu0 0
    %916 = vperm.xlu0 %915, %v854
    %v917 = vpop.permute.xlu0 %916
    %920 = vset.pattern.permute.xlu0 0
    %921 = vperm.xlu0 %920, %v855
    %v922 = vpop.permute.xlu0 %921
    %925 = vset.pattern.permute.xlu0 0
    %926 = vperm.xlu0 %925, %v856
    %v927 = vpop.permute.xlu0 %926
    %930 = vset.pattern.permute.xlu0 0
    %931 = vperm.xlu0 %930, %v857
    %v932 = vpop.permute.xlu0 %931
    %935 = vset.pattern.permute.xlu0 0
    %936 = vperm.xlu0 %935, %v858
    %v937 = vpop.permute.xlu0 %936
    %v939 = vsub.f32 %v862, %v773
    %v940 = vsub.f32 %v867, %v776
    %v941 = vsub.f32 %v872, %v781
    %v942 = vsub.f32 %v877, %v784
    %v943 = vsub.f32 %v882, %v789
    %v944 = vsub.f32 %v887, %v792
    %v945 = vsub.f32 %v892, %v797
    %v946 = vsub.f32 %v897, %v800
    %v947 = vsub.f32 %v902, %v805
    %v948 = vsub.f32 %v907, %v808
    %v949 = vsub.f32 %v912, %v813
    %v950 = vsub.f32 %v917, %v816
    %v951 = vsub.f32 %v922, %v821
    %v952 = vsub.f32 %v927, %v824
    %v953 = vsub.f32 %v932, %v829
    %v954 = vsub.f32 %v937, %v832
    %s955 = scalar_lea.vmem %s5, 8
    %v956 = vld [vmem:[%s955] sm:$0xff]
    %958 = vset.pattern.permute.xlu0 0
    %959 = vperm.xlu0 %958, %v956
    %v960 = vpop.permute.xlu0 %959
    %v962 = vadd.f32 %v837, %v960
    %v963 = vmin.f32 %v939, %v943
    %v964 = vmin.f32 %v940, %v944
    %v965 = vmin.f32 %v941, %v945
    %v966 = vmin.f32 %v942, %v946
    %v967 = vmin.f32 %v963, %v947
    %v968 = vmin.f32 %v964, %v948
    %v969 = vmin.f32 %v965, %v949
    %v970 = vmin.f32 %v966, %v950
    %v971 = vmin.f32 %v967, %v951
    %v972 = vmin.f32 %v968, %v952
    %v973 = vmin.f32 %v969, %v953
    %v974 = vmin.f32 %v970, %v954
    %v975 = vmin.f32 %v971, %v972
    %v976 = vmin.f32 %v973, %v974
    %v977 = vmin.f32 %v975, %v976
    %v978 = vrot.slane %v977, 4
    %v979 = vmin.f32 %v977, %v978
    %v980 = vrot.slane %v979, 2
    %v981 = vmin.f32 %v979, %v980
    %v982 = vrot.slane %v981, 1
    %v983 = vmin.f32 %v981, %v982
    %vm984 = vcmp.le.f32.partialorder %v939, %v983
    %vm985 = vcmp.le.f32.partialorder %v940, %v983
    %vm986 = vcmp.le.f32.partialorder %v941, %v983
    %vm987 = vcmp.le.f32.partialorder %v942, %v983
    %vm988 = vcmp.le.f32.partialorder %v943, %v983
    %vm989 = vcmp.le.f32.partialorder %v944, %v983
    %vm990 = vcmp.le.f32.partialorder %v945, %v983
    %vm991 = vcmp.le.f32.partialorder %v946, %v983
    %vm992 = vcmp.le.f32.partialorder %v947, %v983
    %vm993 = vcmp.le.f32.partialorder %v948, %v983
    %vm994 = vcmp.le.f32.partialorder %v949, %v983
    %vm995 = vcmp.le.f32.partialorder %v950, %v983
    %vm996 = vcmp.le.f32.partialorder %v951, %v983
    %vm997 = vcmp.le.f32.partialorder %v952, %v983
    %vm998 = vcmp.le.f32.partialorder %v953, %v983
    %vm999 = vcmp.le.f32.partialorder %v954, %v983
    %v1000 = vsel %vm984, %v34, 128
    %v1001 = vsel %vm985, %v35, 128
    %v1002 = vsel %vm986, %v36, 128
    %v1003 = vsel %vm987, %v37, 128
    %v1004 = vsel %vm988, %v38, 128
    %v1005 = vsel %vm989, %v39, 128
    %v1006 = vsel %vm990, %v40, 128
    %v1007 = vsel %vm991, %v41, 128
    %v1008 = vsel %vm992, %v42, 128
    %v1009 = vsel %vm993, %v43, 128
    %v1010 = vsel %vm994, %v44, 128
    %v1011 = vsel %vm995, %v45, 128
    %v1012 = vsel %vm996, %v46, 128
    %v1013 = vsel %vm997, %v47, 128
    %v1014 = vsel %vm998, %v48, 128
    %v1015 = vsel %vm999, %v49, 128
    %vm1016 = vcmp.lt.s32.totalorder %v1000, %v1004
    %v1017 = vsel %vm1016, %v1000, %v1004
    %vm1018 = vcmp.lt.s32.totalorder %v1001, %v1005
    %v1019 = vsel %vm1018, %v1001, %v1005
    %vm1020 = vcmp.lt.s32.totalorder %v1002, %v1006
    %v1021 = vsel %vm1020, %v1002, %v1006
    %vm1022 = vcmp.lt.s32.totalorder %v1003, %v1007
    %v1023 = vsel %vm1022, %v1003, %v1007
    %vm1024 = vcmp.lt.s32.totalorder %v1017, %v1008
    %v1025 = vsel %vm1024, %v1017, %v1008
    %vm1026 = vcmp.lt.s32.totalorder %v1019, %v1009
    %v1027 = vsel %vm1026, %v1019, %v1009
    %vm1028 = vcmp.lt.s32.totalorder %v1021, %v1010
    %v1029 = vsel %vm1028, %v1021, %v1010
    %vm1030 = vcmp.lt.s32.totalorder %v1023, %v1011
    %v1031 = vsel %vm1030, %v1023, %v1011
    %vm1032 = vcmp.lt.s32.totalorder %v1025, %v1012
    %v1033 = vsel %vm1032, %v1025, %v1012
    %vm1034 = vcmp.lt.s32.totalorder %v1027, %v1013
    %v1035 = vsel %vm1034, %v1027, %v1013
    %vm1036 = vcmp.lt.s32.totalorder %v1029, %v1014
    %v1037 = vsel %vm1036, %v1029, %v1014
    %vm1038 = vcmp.lt.s32.totalorder %v1031, %v1015
    %v1039 = vsel %vm1038, %v1031, %v1015
    %vm1040 = vcmp.lt.s32.totalorder %v1033, %v1035
    %v1041 = vsel %vm1040, %v1033, %v1035
    %vm1042 = vcmp.lt.s32.totalorder %v1037, %v1039
    %v1043 = vsel %vm1042, %v1037, %v1039
    %vm1044 = vcmp.lt.s32.totalorder %v1041, %v1043
    %v1045 = vsel %vm1044, %v1041, %v1043
    %v1046 = vrot.slane %v1045, 4
    %vm1047 = vcmp.lt.s32.totalorder %v1045, %v1046
    %v1048 = vsel %vm1047, %v1045, %v1046
    %v1049 = vrot.slane %v1048, 2
    %vm1050 = vcmp.lt.s32.totalorder %v1048, %v1049
    %v1051 = vsel %vm1050, %v1048, %v1049
    %v1052 = vrot.slane %v1051, 1
    %vm1053 = vcmp.lt.s32.totalorder %v1051, %v1052
    %v1054 = vsel %vm1053, %v1051, %v1052
    %vm1055 = vcmp.eq.s32.totalorder %v34, %v1054
    %vm1056 = vcmp.eq.s32.totalorder %v35, %v1054
    %vm1057 = vcmp.eq.s32.totalorder %v36, %v1054
    %vm1058 = vcmp.eq.s32.totalorder %v37, %v1054
    %vm1059 = vcmp.eq.s32.totalorder %v38, %v1054
    %vm1060 = vcmp.eq.s32.totalorder %v39, %v1054
    %vm1061 = vcmp.eq.s32.totalorder %v40, %v1054
    %vm1062 = vcmp.eq.s32.totalorder %v41, %v1054
    %vm1063 = vcmp.eq.s32.totalorder %v42, %v1054
    %vm1064 = vcmp.eq.s32.totalorder %v43, %v1054
    %vm1065 = vcmp.eq.s32.totalorder %v44, %v1054
    %vm1066 = vcmp.eq.s32.totalorder %v45, %v1054
    %vm1067 = vcmp.eq.s32.totalorder %v46, %v1054
    %vm1068 = vcmp.eq.s32.totalorder %v47, %v1054
    %vm1069 = vcmp.eq.s32.totalorder %v48, %v1054
    %vm1070 = vcmp.eq.s32.totalorder %v49, %v1054
    %v1071 = vsel %vm1055, 1, 0
    %v1072 = vsel %vm1056, 1, 0
    %v1073 = vsel %vm1057, 1, 0
    %v1074 = vsel %vm1058, 1, 0
    %v1075 = vsel %vm1059, 1, 0
    %v1076 = vsel %vm1060, 1, 0
    %v1077 = vsel %vm1061, 1, 0
    %v1078 = vsel %vm1062, 1, 0
    %v1079 = vsel %vm1063, 1, 0
    %v1080 = vsel %vm1064, 1, 0
    %v1081 = vsel %vm1065, 1, 0
    %v1082 = vsel %vm1066, 1, 0
    %v1083 = vsel %vm1067, 1, 0
    %v1084 = vsel %vm1068, 1, 0
    %v1085 = vsel %vm1069, 1, 0
    %v1086 = vsel %vm1070, 1, 0
    %v1087 = vcvt.s32.f32 %v1071
    %v1088 = vcvt.s32.f32 %v1072
    %v1089 = vcvt.s32.f32 %v1073
    %v1090 = vcvt.s32.f32 %v1074
    %v1091 = vcvt.s32.f32 %v1075
    %v1092 = vcvt.s32.f32 %v1076
    %v1093 = vcvt.s32.f32 %v1077
    %v1094 = vcvt.s32.f32 %v1078
    %v1095 = vcvt.s32.f32 %v1079
    %v1096 = vcvt.s32.f32 %v1080
    %v1097 = vcvt.s32.f32 %v1081
    %v1098 = vcvt.s32.f32 %v1082
    %v1099 = vcvt.s32.f32 %v1083
    %v1100 = vcvt.s32.f32 %v1084
    %v1101 = vcvt.s32.f32 %v1085
    %v1102 = vcvt.s32.f32 %v1086
    %v1103 = vpack.c.bf16 %v1088, %v1087
    %v1104 = vpack.c.bf16 %v1090, %v1089
    %v1105 = vpack.c.bf16 %v1092, %v1091
    %v1106 = vpack.c.bf16 %v1094, %v1093
    %v1107 = vpack.c.bf16 %v1096, %v1095
    %v1108 = vpack.c.bf16 %v1098, %v1097
    %v1109 = vpack.c.bf16 %v1100, %v1099
    %v1110 = vpack.c.bf16 %v1102, %v1101
    %s1111 = scalar_lea.vmem %s3, 20
    %v1112 = vld [vmem:[%s1111] sm:$0xf]
    %v1113 = vld [vmem:[%s1111 + $0x4] sm:$0xf]
    %v1114 = vld [vmem:[%s1111 + $0x8] sm:$0xf]
    %v1115 = vld [vmem:[%s1111 + $0xc] sm:$0xf]
    %v1116 = vld [vmem:[%s1111 + $0x10] sm:$0xf]
    %v1122 = vunpack.c.l.b16 %v1112
    %v1123 = vunpack.c.l.b16 %v1113
    %v1124 = vunpack.c.l.b16 %v1114
    %v1125 = vunpack.c.l.b16 %v1115
    %v1126 = vunpack.c.l.b16 %v1116
    %v1127 = vpack.c.b16 %v1123, %v1122
    %v1128 = vpack.c.b16 %v1125, %v1124
    %v1129 = vpack.c.b16 %v1126, %v1126
    %1133 = vmatprep.subr.bf16.mxu0 0
    %1134 = vmatpush1.bf16.msra.mxu0 %v1103
    %1135 = vmatprep.subr.bf16.mxu0 0
    %1136 = vmatpush1.bf16.msra.mxu0 %v1104
    %1137 = vmatprep.subr.bf16.mxu0 0
    %1138 = vmatpush1.bf16.msra.mxu0 %v1105
    %1139 = vmatprep.subr.bf16.mxu0 0
    %1140 = vmatpush1.bf16.msra.mxu0 %v1106
    %1141 = vmatprep.subr.bf16.mxu0 0
    %1142 = vmatpush1.bf16.msra.mxu0 %v1107
    %1143 = vmatprep.subr.bf16.mxu0 0
    %1144 = vmatpush1.bf16.msra.mxu0 %v1108
    %1145 = vmatprep.subr.bf16.mxu0 0
    %1146 = vmatpush1.bf16.msra.mxu0 %v1109
    %1147 = vmatprep.subr.bf16.mxu0 0
    %1148 = vmatpush1.bf16.msra.mxu0 %v1110
    %1149 = vmatprep.subr.bf16.mxu0 0
    %1150 = vmatpush1.bf16.msra.mxu0 0
    %1151 = vmatprep.subr.bf16.mxu0 0
    %1152 = vmatpush1.bf16.msra.mxu0 0
    %1153 = vmatprep.subr.bf16.mxu0 0
    %1154 = vmatpush1.bf16.msra.mxu0 0
    %1155 = vmatprep.subr.bf16.mxu0 0
    %1156 = vmatpush1.bf16.msra.mxu0 0
    %1157 = vmatprep.subr.bf16.mxu0 0
    %1158 = vmatpush1.bf16.msra.mxu0 0
    %1159 = vmatprep.subr.bf16.mxu0 0
    %1160 = vmatpush1.bf16.msra.mxu0 0
    %1161 = vmatprep.subr.bf16.mxu0 0
    %1162 = vmatpush1.bf16.msra.mxu0 0
    %1163 = vmatprep.subr.bf16.mxu0 0
    %1164 = vmatpush1.bf16.msra.mxu0 0
    %1165 = vmatprep.mubr.bf16.mxu0 0
    %1166 = vmatmul.mubr.bf16.gmra.mrb[0].mxu0 %v1127
    %v1167 = vpop.f32.mrb[0].mxu0
    %v1168 = vadd.f32 0.0, %v1167
    %v1169 = vpop.f32.mrb[0].mxu0
    %v1170 = vpop.f32.mrb[0].mxu0
    %v1171 = vadd.f32 0.0, %v1170
    %v1172 = vpop.f32.mrb[0].mxu0
    %1173 = vmatprep.mubr.bf16.mxu0 0
    %1174 = vmatmul.mubr.bf16.gmra.mrb[0].mxu0 %v1128
    %v1175 = vpop.f32.mrb[0].mxu0
    %v1176 = vadd.f32 0.0, %v1175
    %v1177 = vpop.f32.mrb[0].mxu0
    %v1178 = vpop.f32.mrb[0].mxu0
    %v1179 = vadd.f32 0.0, %v1178
    %v1180 = vpop.f32.mrb[0].mxu0
    %1181 = vmatprep.mubr.bf16.mxu0 0
    %1182 = vmatmul.mubr.bf16.gmra.mrb[0].mxu0 %v1129
    %v1183 = vpop.f32.mrb[0].mxu0
    %v1184 = vadd.f32 0.0, %v1183
    %v1185 = vpop.f32.mrb[0].mxu0
    %v1186 = vpop.f32.mrb[0].mxu0
    %v1187 = vpop.f32.mrb[0].mxu0
    %1188 = vdwg.mxu0
    %s1189 = scalar_lea.vmem %s4, 32
    %v1190 = vld [vmem:[%s1189] sm:$0xff]
    %v1191 = vld [vmem:[%s1189 + $0x8] sm:$0xff]
    %v1192 = vld [vmem:[%s1189 + $0x10] sm:$0xff]
    %v1193 = vld [vmem:[%s1189 + $0x18] sm:$0xff]
    %1195 = vset.pattern.permute.xlu0 0
    %1196 = vperm.xlu0 %1195, %v1190
    %v1197 = vpop.permute.xlu0 %1196
    %1200 = vset.pattern.permute.xlu0 0
    %1201 = vperm.xlu0 %1200, %v1191
    %v1202 = vpop.permute.xlu0 %1201
    %1205 = vset.pattern.permute.xlu0 0
    %1206 = vperm.xlu0 %1205, %v1192
    %v1207 = vpop.permute.xlu0 %1206
    %1210 = vset.pattern.permute.xlu0 0
    %1211 = vperm.xlu0 %1210, %v1193
    %v1212 = vpop.permute.xlu0 %1211
    %v1214 = vadd.f32 %v1168, %v1197
    %v1215 = vadd.f32 %v1171, %v1202
    %v1216 = vadd.f32 %v1176, %v1207
    %v1217 = vadd.f32 %v1179, %v1212
    %v1218 = vadd.f32 %v624, %v1214
    %v1219 = vadd.f32 %v625, %v1215
    %v1220 = vadd.f32 %v626, %v1216
    %v1221 = vadd.f32 %v627, %v1217
    %v1222 = vsub.f32 %v628, %v1214
    %v1223 = vsub.f32 %v629, %v1215
    %v1224 = vsub.f32 %v630, %v1216
    %v1225 = vsub.f32 %v631, %v1217
    %1226 = vst [vmem:[#allocation4 + $0x1] sm:$0x1] %v1054
    %v1227 = vsub.f32 %v1184, %v962
    %v1228 = vmul.f32 %v1227, %v57
    %v1229 = vmul.f32 %v1228, %v1228
    %1230 = vadd.xlane.f32.xlu0 %v1229
    %v1231 = vpop.xlane.xlu0 %1230
    %v1232 = vrot.slane %v1231, 4
    %v1233 = vadd.f32 %v1231, %v1232
    %v1234 = vrot.slane %v1233, 2
    %v1235 = vadd.f32 %v1233, %v1234
    %v1236 = vrot.slane %v1235, 1
    %v1237 = vadd.f32 %v1235, %v1236
    %s1238 = vtos %v1237
    %v1239 = vstv %s1238
    %v1240 = vadd.f32 %v1239, 0.0
    %1241 = vst [vmem:[#allocation6 + $0x1] sm:$0x1] %v1240
    %s1242 = scalar_lea.vmem %s1, 136
    %v1243 = vld [vmem:[%s1242] sm:$0xf]
    %v1244 = vld [vmem:[%s1242 + $0x4] sm:$0xf]
    %v1245 = vld [vmem:[%s1242 + $0x8] sm:$0xf]
    %v1246 = vld [vmem:[%s1242 + $0xc] sm:$0xf]
    %v1247 = vld [vmem:[%s1242 + $0x10] sm:$0xf]
    %v1248 = vld [vmem:[%s1242 + $0x14] sm:$0xf]
    %v1249 = vld [vmem:[%s1242 + $0x18] sm:$0xf]
    %v1250 = vld [vmem:[%s1242 + $0x1c] sm:$0xf]
    %v1251 = vld [vmem:[%s1242 + $0x20] sm:$0xf]
    %v1252 = vld [vmem:[%s1242 + $0x24] sm:$0xf]
    %v1253 = vld [vmem:[%s1242 + $0x28] sm:$0xf]
    %v1254 = vld [vmem:[%s1242 + $0x2c] sm:$0xf]
    %v1255 = vld [vmem:[%s1242 + $0x30] sm:$0xf]
    %v1256 = vld [vmem:[%s1242 + $0x34] sm:$0xf]
    %v1257 = vld [vmem:[%s1242 + $0x38] sm:$0xf]
    %v1258 = vld [vmem:[%s1242 + $0x3c] sm:$0xf]
    %v1259 = vld [vmem:[%s1242 + $0x40] sm:$0xf]
    %v1260 = vpack.c.bf16 %v1223, %v1222
    %v1261 = vpack.c.bf16 %v1225, %v1224
    %v1279 = vunpack.c.l.b16 %v1243
    %v1280 = vunpack.c.l.b16 %v1244
    %v1281 = vunpack.c.l.b16 %v1245
    %v1282 = vunpack.c.l.b16 %v1246
    %v1283 = vunpack.c.l.b16 %v1247
    %v1284 = vunpack.c.l.b16 %v1248
    %v1285 = vunpack.c.l.b16 %v1249
    %v1286 = vunpack.c.l.b16 %v1250
    %v1287 = vunpack.c.l.b16 %v1251
    %v1288 = vunpack.c.l.b16 %v1252
    %v1289 = vunpack.c.l.b16 %v1253
    %v1290 = vunpack.c.l.b16 %v1254
    %v1291 = vunpack.c.l.b16 %v1255
    %v1292 = vunpack.c.l.b16 %v1256
    %v1293 = vunpack.c.l.b16 %v1257
    %v1294 = vunpack.c.l.b16 %v1258
    %v1295 = vunpack.c.l.b16 %v1259
    %v1296 = vpack.c.b16 %v1280, %v1279
    %v1297 = vpack.c.b16 %v1282, %v1281
    %v1298 = vpack.c.b16 %v1284, %v1283
    %v1299 = vpack.c.b16 %v1286, %v1285
    %v1300 = vpack.c.b16 %v1288, %v1287
    %v1301 = vpack.c.b16 %v1290, %v1289
    %v1302 = vpack.c.b16 %v1292, %v1291
    %v1303 = vpack.c.b16 %v1294, %v1293
    %v1304 = vpack.c.b16 %v1295, %v1295
    %v1306 = vsel %vm120, %v1296, 0
    %v1309 = vsel %vm120, %v1297, 0
    %v1312 = vsel %vm120, %v1298, 0
    %v1315 = vsel %vm120, %v1299, 0
    %v1318 = vsel %vm120, %v1300, 0
    %v1321 = vsel %vm120, %v1301, 0
    %v1324 = vsel %vm120, %v1302, 0
    %v1327 = vsel %vm120, %v1303, 0
    %v1330 = vsel %vm120, %v1304, 0
    %1332 = vmatprep.subr.bf16.mxu0 0
    %1333 = vmatpush1.bf16.msra.mxu0 %v1260
    %1334 = vmatprep.subr.bf16.mxu0 0
    %1335 = vmatpush1.bf16.msra.mxu0 %v1261
    %1336 = vmatprep.subr.bf16.mxu0 0
    %1337 = vmatpush1.bf16.msra.mxu0 0
    %1338 = vmatprep.subr.bf16.mxu0 0
    %1339 = vmatpush1.bf16.msra.mxu0 0
    %1340 = vmatprep.subr.bf16.mxu0 0
    %1341 = vmatpush1.bf16.msra.mxu0 0
    %1342 = vmatprep.subr.bf16.mxu0 0
    %1343 = vmatpush1.bf16.msra.mxu0 0
    %1344 = vmatprep.subr.bf16.mxu0 0
    %1345 = vmatpush1.bf16.msra.mxu0 0
    %1346 = vmatprep.subr.bf16.mxu0 0
    %1347 = vmatpush1.bf16.msra.mxu0 0
    %1348 = vmatprep.subr.bf16.mxu0 0
    %1349 = vmatpush1.bf16.msra.mxu0 0
    %1350 = vmatprep.subr.bf16.mxu0 0
    %1351 = vmatpush1.bf16.msra.mxu0 0
    %1352 = vmatprep.subr.bf16.mxu0 0
    %1353 = vmatpush1.bf16.msra.mxu0 0
    %1354 = vmatprep.subr.bf16.mxu0 0
    %1355 = vmatpush1.bf16.msra.mxu0 0
    %1356 = vmatprep.subr.bf16.mxu0 0
    %1357 = vmatpush1.bf16.msra.mxu0 0
    %1358 = vmatprep.subr.bf16.mxu0 0
    %1359 = vmatpush1.bf16.msra.mxu0 0
    %1360 = vmatprep.subr.bf16.mxu0 0
    %1361 = vmatpush1.bf16.msra.mxu0 0
    %1362 = vmatprep.subr.bf16.mxu0 0
    %1363 = vmatpush1.bf16.msra.mxu0 0
    %1364 = vmatprep.mubr.bf16.mxu0 0
    %1365 = vmatmul.mubr.bf16.gmra.mrb[0].mxu0 %v1306
    %v1366 = vpop.f32.mrb[0].mxu0
    %v1367 = vadd.f32 0.0, %v1366
    %v1368 = vpop.f32.mrb[0].mxu0
    %v1369 = vpop.f32.mrb[0].mxu0
    %v1370 = vadd.f32 0.0, %v1369
    %v1371 = vpop.f32.mrb[0].mxu0
    %1372 = vmatprep.mubr.bf16.mxu0 0
    %1373 = vmatmul.mubr.bf16.gmra.mrb[0].mxu0 %v1309
    %v1374 = vpop.f32.mrb[0].mxu0
    %v1375 = vadd.f32 0.0, %v1374
    %v1376 = vpop.f32.mrb[0].mxu0
    %v1377 = vpop.f32.mrb[0].mxu0
    %v1378 = vadd.f32 0.0, %v1377
    %v1379 = vpop.f32.mrb[0].mxu0
    %1380 = vmatprep.mubr.bf16.mxu0 0
    %1381 = vmatmul.mubr.bf16.gmra.mrb[0].mxu0 %v1312
    %v1382 = vpop.f32.mrb[0].mxu0
    %v1383 = vadd.f32 0.0, %v1382
    %v1384 = vpop.f32.mrb[0].mxu0
    %v1385 = vpop.f32.mrb[0].mxu0
    %v1386 = vadd.f32 0.0, %v1385
    %v1387 = vpop.f32.mrb[0].mxu0
    %1388 = vmatprep.mubr.bf16.mxu0 0
    %1389 = vmatmul.mubr.bf16.gmra.mrb[0].mxu0 %v1315
    %v1390 = vpop.f32.mrb[0].mxu0
    %v1391 = vadd.f32 0.0, %v1390
    %v1392 = vpop.f32.mrb[0].mxu0
    %v1393 = vpop.f32.mrb[0].mxu0
    %v1394 = vadd.f32 0.0, %v1393
    %v1395 = vpop.f32.mrb[0].mxu0
    %1396 = vmatprep.mubr.bf16.mxu0 0
    %1397 = vmatmul.mubr.bf16.gmra.mrb[0].mxu0 %v1318
    %v1398 = vpop.f32.mrb[0].mxu0
    %v1399 = vadd.f32 0.0, %v1398
    %v1400 = vpop.f32.mrb[0].mxu0
    %v1401 = vpop.f32.mrb[0].mxu0
    %v1402 = vadd.f32 0.0, %v1401
    %v1403 = vpop.f32.mrb[0].mxu0
    %1404 = vmatprep.mubr.bf16.mxu0 0
    %1405 = vmatmul.mubr.bf16.gmra.mrb[0].mxu0 %v1321
    %v1406 = vpop.f32.mrb[0].mxu0
    %v1407 = vadd.f32 0.0, %v1406
    %v1408 = vpop.f32.mrb[0].mxu0
    %v1409 = vpop.f32.mrb[0].mxu0
    %v1410 = vadd.f32 0.0, %v1409
    %v1411 = vpop.f32.mrb[0].mxu0
    %1412 = vmatprep.mubr.bf16.mxu0 0
    %1413 = vmatmul.mubr.bf16.gmra.mrb[0].mxu0 %v1324
    %v1414 = vpop.f32.mrb[0].mxu0
    %v1415 = vadd.f32 0.0, %v1414
    %v1416 = vpop.f32.mrb[0].mxu0
    %v1417 = vpop.f32.mrb[0].mxu0
    %v1418 = vadd.f32 0.0, %v1417
    %v1419 = vpop.f32.mrb[0].mxu0
    %1420 = vmatprep.mubr.bf16.mxu0 0
    %1421 = vmatmul.mubr.bf16.gmra.mrb[0].mxu0 %v1327
    %v1422 = vpop.f32.mrb[0].mxu0
    %v1423 = vadd.f32 0.0, %v1422
    %v1424 = vpop.f32.mrb[0].mxu0
    %v1425 = vpop.f32.mrb[0].mxu0
    %v1426 = vadd.f32 0.0, %v1425
    %v1427 = vpop.f32.mrb[0].mxu0
    %1428 = vmatprep.mubr.bf16.mxu0 0
    %1429 = vmatmul.mubr.bf16.gmra.mrb[0].mxu0 %v1330
    %v1430 = vpop.f32.mrb[0].mxu0
    %v1431 = vadd.f32 0.0, %v1430
    %v1432 = vpop.f32.mrb[0].mxu0
    %v1433 = vpop.f32.mrb[0].mxu0
    %v1434 = vpop.f32.mrb[0].mxu0
    %1435 = vdwg.mxu0
    %s1436 = scalar_lea.vmem %s2, 256
    %v1437 = vld [vmem:[%s1436] sm:$0xff]
    %v1438 = vld [vmem:[%s1436 + $0x8] sm:$0xff]
    %v1439 = vld [vmem:[%s1436 + $0x10] sm:$0xff]
    %v1440 = vld [vmem:[%s1436 + $0x18] sm:$0xff]
    %v1441 = vld [vmem:[%s1436 + $0x20] sm:$0xff]
    %v1442 = vld [vmem:[%s1436 + $0x28] sm:$0xff]
    %v1443 = vld [vmem:[%s1436 + $0x30] sm:$0xff]
    %v1444 = vld [vmem:[%s1436 + $0x38] sm:$0xff]
    %v1445 = vld [vmem:[%s1436 + $0x40] sm:$0xff]
    %v1446 = vld [vmem:[%s1436 + $0x48] sm:$0xff]
    %v1447 = vld [vmem:[%s1436 + $0x50] sm:$0xff]
    %v1448 = vld [vmem:[%s1436 + $0x58] sm:$0xff]
    %v1449 = vld [vmem:[%s1436 + $0x60] sm:$0xff]
    %v1450 = vld [vmem:[%s1436 + $0x68] sm:$0xff]
    %v1451 = vld [vmem:[%s1436 + $0x70] sm:$0xff]
    %v1452 = vld [vmem:[%s1436 + $0x78] sm:$0xff]
    %1454 = vset.pattern.permute.xlu0 0
    %1455 = vperm.xlu0 %1454, %v1437
    %v1456 = vpop.permute.xlu0 %1455
    %1459 = vset.pattern.permute.xlu0 0
    %1460 = vperm.xlu0 %1459, %v1438
    %v1461 = vpop.permute.xlu0 %1460
    %1464 = vset.pattern.permute.xlu0 0
    %1465 = vperm.xlu0 %1464, %v1439
    %v1466 = vpop.permute.xlu0 %1465
    %1469 = vset.pattern.permute.xlu0 0
    %1470 = vperm.xlu0 %1469, %v1440
    %v1471 = vpop.permute.xlu0 %1470
    %1474 = vset.pattern.permute.xlu0 0
    %1475 = vperm.xlu0 %1474, %v1441
    %v1476 = vpop.permute.xlu0 %1475
    %1479 = vset.pattern.permute.xlu0 0
    %1480 = vperm.xlu0 %1479, %v1442
    %v1481 = vpop.permute.xlu0 %1480
    %1484 = vset.pattern.permute.xlu0 0
    %1485 = vperm.xlu0 %1484, %v1443
    %v1486 = vpop.permute.xlu0 %1485
    %1489 = vset.pattern.permute.xlu0 0
    %1490 = vperm.xlu0 %1489, %v1444
    %v1491 = vpop.permute.xlu0 %1490
    %1494 = vset.pattern.permute.xlu0 0
    %1495 = vperm.xlu0 %1494, %v1445
    %v1496 = vpop.permute.xlu0 %1495
    %1499 = vset.pattern.permute.xlu0 0
    %1500 = vperm.xlu0 %1499, %v1446
    %v1501 = vpop.permute.xlu0 %1500
    %1504 = vset.pattern.permute.xlu0 0
    %1505 = vperm.xlu0 %1504, %v1447
    %v1506 = vpop.permute.xlu0 %1505
    %1509 = vset.pattern.permute.xlu0 0
    %1510 = vperm.xlu0 %1509, %v1448
    %v1511 = vpop.permute.xlu0 %1510
    %1514 = vset.pattern.permute.xlu0 0
    %1515 = vperm.xlu0 %1514, %v1449
    %v1516 = vpop.permute.xlu0 %1515
    %1519 = vset.pattern.permute.xlu0 0
    %1520 = vperm.xlu0 %1519, %v1450
    %v1521 = vpop.permute.xlu0 %1520
    %1524 = vset.pattern.permute.xlu0 0
    %1525 = vperm.xlu0 %1524, %v1451
    %v1526 = vpop.permute.xlu0 %1525
    %1529 = vset.pattern.permute.xlu0 0
    %1530 = vperm.xlu0 %1529, %v1452
    %v1531 = vpop.permute.xlu0 %1530
    %v1533 = vsub.f32 %v1456, %v1367
    %v1534 = vsub.f32 %v1461, %v1370
    %v1535 = vsub.f32 %v1466, %v1375
    %v1536 = vsub.f32 %v1471, %v1378
    %v1537 = vsub.f32 %v1476, %v1383
    %v1538 = vsub.f32 %v1481, %v1386
    %v1539 = vsub.f32 %v1486, %v1391
    %v1540 = vsub.f32 %v1491, %v1394
    %v1541 = vsub.f32 %v1496, %v1399
    %v1542 = vsub.f32 %v1501, %v1402
    %v1543 = vsub.f32 %v1506, %v1407
    %v1544 = vsub.f32 %v1511, %v1410
    %v1545 = vsub.f32 %v1516, %v1415
    %v1546 = vsub.f32 %v1521, %v1418
    %v1547 = vsub.f32 %v1526, %v1423
    %v1548 = vsub.f32 %v1531, %v1426
    %s1549 = scalar_lea.vmem %s5, 16
    %v1550 = vld [vmem:[%s1549] sm:$0xff]
    %1552 = vset.pattern.permute.xlu0 0
    %1553 = vperm.xlu0 %1552, %v1550
    %v1554 = vpop.permute.xlu0 %1553
    %v1556 = vadd.f32 %v1431, %v1554
    %v1557 = vmin.f32 %v1533, %v1537
    %v1558 = vmin.f32 %v1534, %v1538
    %v1559 = vmin.f32 %v1535, %v1539
    %v1560 = vmin.f32 %v1536, %v1540
    %v1561 = vmin.f32 %v1557, %v1541
    %v1562 = vmin.f32 %v1558, %v1542
    %v1563 = vmin.f32 %v1559, %v1543
    %v1564 = vmin.f32 %v1560, %v1544
    %v1565 = vmin.f32 %v1561, %v1545
    %v1566 = vmin.f32 %v1562, %v1546
    %v1567 = vmin.f32 %v1563, %v1547
    %v1568 = vmin.f32 %v1564, %v1548
    %v1569 = vmin.f32 %v1565, %v1566
    %v1570 = vmin.f32 %v1567, %v1568
    %v1571 = vmin.f32 %v1569, %v1570
    %v1572 = vrot.slane %v1571, 4
    %v1573 = vmin.f32 %v1571, %v1572
    %v1574 = vrot.slane %v1573, 2
    %v1575 = vmin.f32 %v1573, %v1574
    %v1576 = vrot.slane %v1575, 1
    %v1577 = vmin.f32 %v1575, %v1576
    %vm1578 = vcmp.le.f32.partialorder %v1533, %v1577
    %vm1579 = vcmp.le.f32.partialorder %v1534, %v1577
    %vm1580 = vcmp.le.f32.partialorder %v1535, %v1577
    %vm1581 = vcmp.le.f32.partialorder %v1536, %v1577
    %vm1582 = vcmp.le.f32.partialorder %v1537, %v1577
    %vm1583 = vcmp.le.f32.partialorder %v1538, %v1577
    %vm1584 = vcmp.le.f32.partialorder %v1539, %v1577
    %vm1585 = vcmp.le.f32.partialorder %v1540, %v1577
    %vm1586 = vcmp.le.f32.partialorder %v1541, %v1577
    %vm1587 = vcmp.le.f32.partialorder %v1542, %v1577
    %vm1588 = vcmp.le.f32.partialorder %v1543, %v1577
    %vm1589 = vcmp.le.f32.partialorder %v1544, %v1577
    %vm1590 = vcmp.le.f32.partialorder %v1545, %v1577
    %vm1591 = vcmp.le.f32.partialorder %v1546, %v1577
    %vm1592 = vcmp.le.f32.partialorder %v1547, %v1577
    %vm1593 = vcmp.le.f32.partialorder %v1548, %v1577
    %v1594 = vsel %vm1578, %v34, 128
    %v1595 = vsel %vm1579, %v35, 128
    %v1596 = vsel %vm1580, %v36, 128
    %v1597 = vsel %vm1581, %v37, 128
    %v1598 = vsel %vm1582, %v38, 128
    %v1599 = vsel %vm1583, %v39, 128
    %v1600 = vsel %vm1584, %v40, 128
    %v1601 = vsel %vm1585, %v41, 128
    %v1602 = vsel %vm1586, %v42, 128
    %v1603 = vsel %vm1587, %v43, 128
    %v1604 = vsel %vm1588, %v44, 128
    %v1605 = vsel %vm1589, %v45, 128
    %v1606 = vsel %vm1590, %v46, 128
    %v1607 = vsel %vm1591, %v47, 128
    %v1608 = vsel %vm1592, %v48, 128
    %v1609 = vsel %vm1593, %v49, 128
    %vm1610 = vcmp.lt.s32.totalorder %v1594, %v1598
    %v1611 = vsel %vm1610, %v1594, %v1598
    %vm1612 = vcmp.lt.s32.totalorder %v1595, %v1599
    %v1613 = vsel %vm1612, %v1595, %v1599
    %vm1614 = vcmp.lt.s32.totalorder %v1596, %v1600
    %v1615 = vsel %vm1614, %v1596, %v1600
    %vm1616 = vcmp.lt.s32.totalorder %v1597, %v1601
    %v1617 = vsel %vm1616, %v1597, %v1601
    %vm1618 = vcmp.lt.s32.totalorder %v1611, %v1602
    %v1619 = vsel %vm1618, %v1611, %v1602
    %vm1620 = vcmp.lt.s32.totalorder %v1613, %v1603
    %v1621 = vsel %vm1620, %v1613, %v1603
    %vm1622 = vcmp.lt.s32.totalorder %v1615, %v1604
    %v1623 = vsel %vm1622, %v1615, %v1604
    %vm1624 = vcmp.lt.s32.totalorder %v1617, %v1605
    %v1625 = vsel %vm1624, %v1617, %v1605
    %vm1626 = vcmp.lt.s32.totalorder %v1619, %v1606
    %v1627 = vsel %vm1626, %v1619, %v1606
    %vm1628 = vcmp.lt.s32.totalorder %v1621, %v1607
    %v1629 = vsel %vm1628, %v1621, %v1607
    %vm1630 = vcmp.lt.s32.totalorder %v1623, %v1608
    %v1631 = vsel %vm1630, %v1623, %v1608
    %vm1632 = vcmp.lt.s32.totalorder %v1625, %v1609
    %v1633 = vsel %vm1632, %v1625, %v1609
    %vm1634 = vcmp.lt.s32.totalorder %v1627, %v1629
    %v1635 = vsel %vm1634, %v1627, %v1629
    %vm1636 = vcmp.lt.s32.totalorder %v1631, %v1633
    %v1637 = vsel %vm1636, %v1631, %v1633
    %vm1638 = vcmp.lt.s32.totalorder %v1635, %v1637
    %v1639 = vsel %vm1638, %v1635, %v1637
    %v1640 = vrot.slane %v1639, 4
    %vm1641 = vcmp.lt.s32.totalorder %v1639, %v1640
    %v1642 = vsel %vm1641, %v1639, %v1640
    %v1643 = vrot.slane %v1642, 2
    %vm1644 = vcmp.lt.s32.totalorder %v1642, %v1643
    %v1645 = vsel %vm1644, %v1642, %v1643
    %v1646 = vrot.slane %v1645, 1
    %vm1647 = vcmp.lt.s32.totalorder %v1645, %v1646
    %v1648 = vsel %vm1647, %v1645, %v1646
    %vm1649 = vcmp.eq.s32.totalorder %v34, %v1648
    %vm1650 = vcmp.eq.s32.totalorder %v35, %v1648
    %vm1651 = vcmp.eq.s32.totalorder %v36, %v1648
    %vm1652 = vcmp.eq.s32.totalorder %v37, %v1648
    %vm1653 = vcmp.eq.s32.totalorder %v38, %v1648
    %vm1654 = vcmp.eq.s32.totalorder %v39, %v1648
    %vm1655 = vcmp.eq.s32.totalorder %v40, %v1648
    %vm1656 = vcmp.eq.s32.totalorder %v41, %v1648
    %vm1657 = vcmp.eq.s32.totalorder %v42, %v1648
    %vm1658 = vcmp.eq.s32.totalorder %v43, %v1648
    %vm1659 = vcmp.eq.s32.totalorder %v44, %v1648
    %vm1660 = vcmp.eq.s32.totalorder %v45, %v1648
    %vm1661 = vcmp.eq.s32.totalorder %v46, %v1648
    %vm1662 = vcmp.eq.s32.totalorder %v47, %v1648
    %vm1663 = vcmp.eq.s32.totalorder %v48, %v1648
    %vm1664 = vcmp.eq.s32.totalorder %v49, %v1648
    %v1665 = vsel %vm1649, 1, 0
    %v1666 = vsel %vm1650, 1, 0
    %v1667 = vsel %vm1651, 1, 0
    %v1668 = vsel %vm1652, 1, 0
    %v1669 = vsel %vm1653, 1, 0
    %v1670 = vsel %vm1654, 1, 0
    %v1671 = vsel %vm1655, 1, 0
    %v1672 = vsel %vm1656, 1, 0
    %v1673 = vsel %vm1657, 1, 0
    %v1674 = vsel %vm1658, 1, 0
    %v1675 = vsel %vm1659, 1, 0
    %v1676 = vsel %vm1660, 1, 0
    %v1677 = vsel %vm1661, 1, 0
    %v1678 = vsel %vm1662, 1, 0
    %v1679 = vsel %vm1663, 1, 0
    %v1680 = vsel %vm1664, 1, 0
    %v1681 = vcvt.s32.f32 %v1665
    %v1682 = vcvt.s32.f32 %v1666
    %v1683 = vcvt.s32.f32 %v1667
    %v1684 = vcvt.s32.f32 %v1668
    %v1685 = vcvt.s32.f32 %v1669
    %v1686 = vcvt.s32.f32 %v1670
    %v1687 = vcvt.s32.f32 %v1671
    %v1688 = vcvt.s32.f32 %v1672
    %v1689 = vcvt.s32.f32 %v1673
    %v1690 = vcvt.s32.f32 %v1674
    %v1691 = vcvt.s32.f32 %v1675
    %v1692 = vcvt.s32.f32 %v1676
    %v1693 = vcvt.s32.f32 %v1677
    %v1694 = vcvt.s32.f32 %v1678
    %v1695 = vcvt.s32.f32 %v1679
    %v1696 = vcvt.s32.f32 %v1680
    %v1697 = vpack.c.bf16 %v1682, %v1681
    %v1698 = vpack.c.bf16 %v1684, %v1683
    %v1699 = vpack.c.bf16 %v1686, %v1685
    %v1700 = vpack.c.bf16 %v1688, %v1687
    %v1701 = vpack.c.bf16 %v1690, %v1689
    %v1702 = vpack.c.bf16 %v1692, %v1691
    %v1703 = vpack.c.bf16 %v1694, %v1693
    %v1704 = vpack.c.bf16 %v1696, %v1695
    %s1705 = scalar_lea.vmem %s3, 40
    %v1706 = vld [vmem:[%s1705] sm:$0xf]
    %v1707 = vld [vmem:[%s1705 + $0x4] sm:$0xf]
    %v1708 = vld [vmem:[%s1705 + $0x8] sm:$0xf]
    %v1709 = vld [vmem:[%s1705 + $0xc] sm:$0xf]
    %v1710 = vld [vmem:[%s1705 + $0x10] sm:$0xf]
    %v1716 = vunpack.c.l.b16 %v1706
    %v1717 = vunpack.c.l.b16 %v1707
    %v1718 = vunpack.c.l.b16 %v1708
    %v1719 = vunpack.c.l.b16 %v1709
    %v1720 = vunpack.c.l.b16 %v1710
    %v1721 = vpack.c.b16 %v1717, %v1716
    %v1722 = vpack.c.b16 %v1719, %v1718
    %v1723 = vpack.c.b16 %v1720, %v1720
    %1727 = vmatprep.subr.bf16.mxu0 0
    %1728 = vmatpush1.bf16.msra.mxu0 %v1697
    %1729 = vmatprep.subr.bf16.mxu0 0
    %1730 = vmatpush1.bf16.msra.mxu0 %v1698
    %1731 = vmatprep.subr.bf16.mxu0 0
    %1732 = vmatpush1.bf16.msra.mxu0 %v1699
    %1733 = vmatprep.subr.bf16.mxu0 0
    %1734 = vmatpush1.bf16.msra.mxu0 %v1700
    %1735 = vmatprep.subr.bf16.mxu0 0
    %1736 = vmatpush1.bf16.msra.mxu0 %v1701
    %1737 = vmatprep.subr.bf16.mxu0 0
    %1738 = vmatpush1.bf16.msra.mxu0 %v1702
    %1739 = vmatprep.subr.bf16.mxu0 0
    %1740 = vmatpush1.bf16.msra.mxu0 %v1703
    %1741 = vmatprep.subr.bf16.mxu0 0
    %1742 = vmatpush1.bf16.msra.mxu0 %v1704
    %1743 = vmatprep.subr.bf16.mxu0 0
    %1744 = vmatpush1.bf16.msra.mxu0 0
    %1745 = vmatprep.subr.bf16.mxu0 0
    %1746 = vmatpush1.bf16.msra.mxu0 0
    %1747 = vmatprep.subr.bf16.mxu0 0
    %1748 = vmatpush1.bf16.msra.mxu0 0
    %1749 = vmatprep.subr.bf16.mxu0 0
    %1750 = vmatpush1.bf16.msra.mxu0 0
    %1751 = vmatprep.subr.bf16.mxu0 0
    %1752 = vmatpush1.bf16.msra.mxu0 0
    %1753 = vmatprep.subr.bf16.mxu0 0
    %1754 = vmatpush1.bf16.msra.mxu0 0
    %1755 = vmatprep.subr.bf16.mxu0 0
    %1756 = vmatpush1.bf16.msra.mxu0 0
    %1757 = vmatprep.subr.bf16.mxu0 0
    %1758 = vmatpush1.bf16.msra.mxu0 0
    %1759 = vmatprep.mubr.bf16.mxu0 0
    %1760 = vmatmul.mubr.bf16.gmra.mrb[0].mxu0 %v1721
    %v1761 = vpop.f32.mrb[0].mxu0
    %v1762 = vadd.f32 0.0, %v1761
    %v1763 = vpop.f32.mrb[0].mxu0
    %v1764 = vpop.f32.mrb[0].mxu0
    %v1765 = vadd.f32 0.0, %v1764
    %v1766 = vpop.f32.mrb[0].mxu0
    %1767 = vmatprep.mubr.bf16.mxu0 0
    %1768 = vmatmul.mubr.bf16.gmra.mrb[0].mxu0 %v1722
    %v1769 = vpop.f32.mrb[0].mxu0
    %v1770 = vadd.f32 0.0, %v1769
    %v1771 = vpop.f32.mrb[0].mxu0
    %v1772 = vpop.f32.mrb[0].mxu0
    %v1773 = vadd.f32 0.0, %v1772
    %v1774 = vpop.f32.mrb[0].mxu0
    %1775 = vmatprep.mubr.bf16.mxu0 0
    %1776 = vmatmul.mubr.bf16.gmra.mrb[0].mxu0 %v1723
    %v1777 = vpop.f32.mrb[0].mxu0
    %v1778 = vadd.f32 0.0, %v1777
    %v1779 = vpop.f32.mrb[0].mxu0
    %v1780 = vpop.f32.mrb[0].mxu0
    %v1781 = vpop.f32.mrb[0].mxu0
    %1782 = vdwg.mxu0
    %s1783 = scalar_lea.vmem %s4, 64
    %v1784 = vld [vmem:[%s1783] sm:$0xff]
    %v1785 = vld [vmem:[%s1783 + $0x8] sm:$0xff]
    %v1786 = vld [vmem:[%s1783 + $0x10] sm:$0xff]
    %v1787 = vld [vmem:[%s1783 + $0x18] sm:$0xff]
    %1789 = vset.pattern.permute.xlu0 0
    %1790 = vperm.xlu0 %1789, %v1784
    %v1791 = vpop.permute.xlu0 %1790
    %1794 = vset.pattern.permute.xlu0 0
    %1795 = vperm.xlu0 %1794, %v1785
    %v1796 = vpop.permute.xlu0 %1795
    %1799 = vset.pattern.permute.xlu0 0
    %1800 = vperm.xlu0 %1799, %v1786
    %v1801 = vpop.permute.xlu0 %1800
    %1804 = vset.pattern.permute.xlu0 0
    %1805 = vperm.xlu0 %1804, %v1787
    %v1806 = vpop.permute.xlu0 %1805
    %v1808 = vadd.f32 %v1762, %v1791
    %v1809 = vadd.f32 %v1765, %v1796
    %v1810 = vadd.f32 %v1770, %v1801
    %v1811 = vadd.f32 %v1773, %v1806
    %v1812 = vadd.f32 %v1218, %v1808
    %v1813 = vadd.f32 %v1219, %v1809
    %v1814 = vadd.f32 %v1220, %v1810
    %v1815 = vadd.f32 %v1221, %v1811
    %v1816 = vsub.f32 %v1222, %v1808
    %v1817 = vsub.f32 %v1223, %v1809
    %v1818 = vsub.f32 %v1224, %v1810
    %v1819 = vsub.f32 %v1225, %v1811
    %1820 = vst [vmem:[#allocation4 + $0x2] sm:$0x1] %v1648
    %v1821 = vsub.f32 %v1778, %v1556
    %v1822 = vmul.f32 %v1821, %v57
    %v1823 = vmul.f32 %v1822, %v1822
    %1824 = vadd.xlane.f32.xlu0 %v1823
    %v1825 = vpop.xlane.xlu0 %1824
    %v1826 = vrot.slane %v1825, 4
    %v1827 = vadd.f32 %v1825, %v1826
    %v1828 = vrot.slane %v1827, 2
    %v1829 = vadd.f32 %v1827, %v1828
    %v1830 = vrot.slane %v1829, 1
    %v1831 = vadd.f32 %v1829, %v1830
    %s1832 = vtos %v1831
    %v1833 = vstv %s1832
    %v1834 = vadd.f32 %v1833, 0.0
    %1835 = vst [vmem:[#allocation6 + $0x2] sm:$0x1] %v1834
    %s1836 = scalar_lea.vmem %s1, 204
    %v1837 = vld [vmem:[%s1836] sm:$0xf]
    %v1838 = vld [vmem:[%s1836 + $0x4] sm:$0xf]
    %v1839 = vld [vmem:[%s1836 + $0x8] sm:$0xf]
    %v1840 = vld [vmem:[%s1836 + $0xc] sm:$0xf]
    %v1841 = vld [vmem:[%s1836 + $0x10] sm:$0xf]
    %v1842 = vld [vmem:[%s1836 + $0x14] sm:$0xf]
    %v1843 = vld [vmem:[%s1836 + $0x18] sm:$0xf]
    %v1844 = vld [vmem:[%s1836 + $0x1c] sm:$0xf]
    %v1845 = vld [vmem:[%s1836 + $0x20] sm:$0xf]
    %v1846 = vld [vmem:[%s1836 + $0x24] sm:$0xf]
    %v1847 = vld [vmem:[%s1836 + $0x28] sm:$0xf]
    %v1848 = vld [vmem:[%s1836 + $0x2c] sm:$0xf]
    %v1849 = vld [vmem:[%s1836 + $0x30] sm:$0xf]
    %v1850 = vld [vmem:[%s1836 + $0x34] sm:$0xf]
    %v1851 = vld [vmem:[%s1836 + $0x38] sm:$0xf]
    %v1852 = vld [vmem:[%s1836 + $0x3c] sm:$0xf]
    %v1853 = vld [vmem:[%s1836 + $0x40] sm:$0xf]
    %v1854 = vpack.c.bf16 %v1817, %v1816
    %v1855 = vpack.c.bf16 %v1819, %v1818
    %v1873 = vunpack.c.l.b16 %v1837
    %v1874 = vunpack.c.l.b16 %v1838
    %v1875 = vunpack.c.l.b16 %v1839
    %v1876 = vunpack.c.l.b16 %v1840
    %v1877 = vunpack.c.l.b16 %v1841
    %v1878 = vunpack.c.l.b16 %v1842
    %v1879 = vunpack.c.l.b16 %v1843
    %v1880 = vunpack.c.l.b16 %v1844
    %v1881 = vunpack.c.l.b16 %v1845
    %v1882 = vunpack.c.l.b16 %v1846
    %v1883 = vunpack.c.l.b16 %v1847
    %v1884 = vunpack.c.l.b16 %v1848
    %v1885 = vunpack.c.l.b16 %v1849
    %v1886 = vunpack.c.l.b16 %v1850
    %v1887 = vunpack.c.l.b16 %v1851
    %v1888 = vunpack.c.l.b16 %v1852
    %v1889 = vunpack.c.l.b16 %v1853
    %v1890 = vpack.c.b16 %v1874, %v1873
    %v1891 = vpack.c.b16 %v1876, %v1875
    %v1892 = vpack.c.b16 %v1878, %v1877
    %v1893 = vpack.c.b16 %v1880, %v1879
    %v1894 = vpack.c.b16 %v1882, %v1881
    %v1895 = vpack.c.b16 %v1884, %v1883
    %v1896 = vpack.c.b16 %v1886, %v1885
    %v1897 = vpack.c.b16 %v1888, %v1887
    %v1898 = vpack.c.b16 %v1889, %v1889
    %v1900 = vsel %vm120, %v1890, 0
    %v1903 = vsel %vm120, %v1891, 0
    %v1906 = vsel %vm120, %v1892, 0
    %v1909 = vsel %vm120, %v1893, 0
    %v1912 = vsel %vm120, %v1894, 0
    %v1915 = vsel %vm120, %v1895, 0
    %v1918 = vsel %vm120, %v1896, 0
    %v1921 = vsel %vm120, %v1897, 0
    %v1924 = vsel %vm120, %v1898, 0
    %1926 = vmatprep.subr.bf16.mxu0 0
    %1927 = vmatpush1.bf16.msra.mxu0 %v1854
    %1928 = vmatprep.subr.bf16.mxu0 0
    %1929 = vmatpush1.bf16.msra.mxu0 %v1855
    %1930 = vmatprep.subr.bf16.mxu0 0
    %1931 = vmatpush1.bf16.msra.mxu0 0
    %1932 = vmatprep.subr.bf16.mxu0 0
    %1933 = vmatpush1.bf16.msra.mxu0 0
    %1934 = vmatprep.subr.bf16.mxu0 0
    %1935 = vmatpush1.bf16.msra.mxu0 0
    %1936 = vmatprep.subr.bf16.mxu0 0
    %1937 = vmatpush1.bf16.msra.mxu0 0
    %1938 = vmatprep.subr.bf16.mxu0 0
    %1939 = vmatpush1.bf16.msra.mxu0 0
    %1940 = vmatprep.subr.bf16.mxu0 0
    %1941 = vmatpush1.bf16.msra.mxu0 0
    %1942 = vmatprep.subr.bf16.mxu0 0
    %1943 = vmatpush1.bf16.msra.mxu0 0
    %1944 = vmatprep.subr.bf16.mxu0 0
    %1945 = vmatpush1.bf16.msra.mxu0 0
    %1946 = vmatprep.subr.bf16.mxu0 0
    %1947 = vmatpush1.bf16.msra.mxu0 0
    %1948 = vmatprep.subr.bf16.mxu0 0
    %1949 = vmatpush1.bf16.msra.mxu0 0
    %1950 = vmatprep.subr.bf16.mxu0 0
    %1951 = vmatpush1.bf16.msra.mxu0 0
    %1952 = vmatprep.subr.bf16.mxu0 0
    %1953 = vmatpush1.bf16.msra.mxu0 0
    %1954 = vmatprep.subr.bf16.mxu0 0
    %1955 = vmatpush1.bf16.msra.mxu0 0
    %1956 = vmatprep.subr.bf16.mxu0 0
    %1957 = vmatpush1.bf16.msra.mxu0 0
    %1958 = vmatprep.mubr.bf16.mxu0 0
    %1959 = vmatmul.mubr.bf16.gmra.mrb[0].mxu0 %v1900
    %v1960 = vpop.f32.mrb[0].mxu0
    %v1961 = vadd.f32 0.0, %v1960
    %v1962 = vpop.f32.mrb[0].mxu0
    %v1963 = vpop.f32.mrb[0].mxu0
    %v1964 = vadd.f32 0.0, %v1963
    %v1965 = vpop.f32.mrb[0].mxu0
    %1966 = vmatprep.mubr.bf16.mxu0 0
    %1967 = vmatmul.mubr.bf16.gmra.mrb[0].mxu0 %v1903
    %v1968 = vpop.f32.mrb[0].mxu0
    %v1969 = vadd.f32 0.0, %v1968
    %v1970 = vpop.f32.mrb[0].mxu0
    %v1971 = vpop.f32.mrb[0].mxu0
    %v1972 = vadd.f32 0.0, %v1971
    %v1973 = vpop.f32.mrb[0].mxu0
    %1974 = vmatprep.mubr.bf16.mxu0 0
    %1975 = vmatmul.mubr.bf16.gmra.mrb[0].mxu0 %v1906
    %v1976 = vpop.f32.mrb[0].mxu0
    %v1977 = vadd.f32 0.0, %v1976
    %v1978 = vpop.f32.mrb[0].mxu0
    %v1979 = vpop.f32.mrb[0].mxu0
    %v1980 = vadd.f32 0.0, %v1979
    %v1981 = vpop.f32.mrb[0].mxu0
    %1982 = vmatprep.mubr.bf16.mxu0 0
    %1983 = vmatmul.mubr.bf16.gmra.mrb[0].mxu0 %v1909
    %v1984 = vpop.f32.mrb[0].mxu0
    %v1985 = vadd.f32 0.0, %v1984
    %v1986 = vpop.f32.mrb[0].mxu0
    %v1987 = vpop.f32.mrb[0].mxu0
    %v1988 = vadd.f32 0.0, %v1987
    %v1989 = vpop.f32.mrb[0].mxu0
    %1990 = vmatprep.mubr.bf16.mxu0 0
    %1991 = vmatmul.mubr.bf16.gmra.mrb[0].mxu0 %v1912
    %v1992 = vpop.f32.mrb[0].mxu0
    %v1993 = vadd.f32 0.0, %v1992
    %v1994 = vpop.f32.mrb[0].mxu0
    %v1995 = vpop.f32.mrb[0].mxu0
    %v1996 = vadd.f32 0.0, %v1995
    %v1997 = vpop.f32.mrb[0].mxu0
    %1998 = vmatprep.mubr.bf16.mxu0 0
    %1999 = vmatmul.mubr.bf16.gmra.mrb[0].mxu0 %v1915
    %v2000 = vpop.f32.mrb[0].mxu0
    %v2001 = vadd.f32 0.0, %v2000
    %v2002 = vpop.f32.mrb[0].mxu0
    %v2003 = vpop.f32.mrb[0].mxu0
    %v2004 = vadd.f32 0.0, %v2003
    %v2005 = vpop.f32.mrb[0].mxu0
    %2006 = vmatprep.mubr.bf16.mxu0 0
    %2007 = vmatmul.mubr.bf16.gmra.mrb[0].mxu0 %v1918
    %v2008 = vpop.f32.mrb[0].mxu0
    %v2009 = vadd.f32 0.0, %v2008
    %v2010 = vpop.f32.mrb[0].mxu0
    %v2011 = vpop.f32.mrb[0].mxu0
    %v2012 = vadd.f32 0.0, %v2011
    %v2013 = vpop.f32.mrb[0].mxu0
    %2014 = vmatprep.mubr.bf16.mxu0 0
    %2015 = vmatmul.mubr.bf16.gmra.mrb[0].mxu0 %v1921
    %v2016 = vpop.f32.mrb[0].mxu0
    %v2017 = vadd.f32 0.0, %v2016
    %v2018 = vpop.f32.mrb[0].mxu0
    %v2019 = vpop.f32.mrb[0].mxu0
    %v2020 = vadd.f32 0.0, %v2019
    %v2021 = vpop.f32.mrb[0].mxu0
    %2022 = vmatprep.mubr.bf16.mxu0 0
    %2023 = vmatmul.mubr.bf16.gmra.mrb[0].mxu0 %v1924
    %v2024 = vpop.f32.mrb[0].mxu0
    %v2025 = vadd.f32 0.0, %v2024
    %v2026 = vpop.f32.mrb[0].mxu0
    %v2027 = vpop.f32.mrb[0].mxu0
    %v2028 = vpop.f32.mrb[0].mxu0
    %2029 = vdwg.mxu0
    %s2030 = scalar_lea.vmem %s2, 384
    %v2031 = vld [vmem:[%s2030] sm:$0xff]
    %v2032 = vld [vmem:[%s2030 + $0x8] sm:$0xff]
    %v2033 = vld [vmem:[%s2030 + $0x10] sm:$0xff]
    %v2034 = vld [vmem:[%s2030 + $0x18] sm:$0xff]
    %v2035 = vld [vmem:[%s2030 + $0x20] sm:$0xff]
    %v2036 = vld [vmem:[%s2030 + $0x28] sm:$0xff]
    %v2037 = vld [vmem:[%s2030 + $0x30] sm:$0xff]
    %v2038 = vld [vmem:[%s2030 + $0x38] sm:$0xff]
    %v2039 = vld [vmem:[%s2030 + $0x40] sm:$0xff]
    %v2040 = vld [vmem:[%s2030 + $0x48] sm:$0xff]
    %v2041 = vld [vmem:[%s2030 + $0x50] sm:$0xff]
    %v2042 = vld [vmem:[%s2030 + $0x58] sm:$0xff]
    %v2043 = vld [vmem:[%s2030 + $0x60] sm:$0xff]
    %v2044 = vld [vmem:[%s2030 + $0x68] sm:$0xff]
    %v2045 = vld [vmem:[%s2030 + $0x70] sm:$0xff]
    %v2046 = vld [vmem:[%s2030 + $0x78] sm:$0xff]
    %2048 = vset.pattern.permute.xlu0 0
    %2049 = vperm.xlu0 %2048, %v2031
    %v2050 = vpop.permute.xlu0 %2049
    %2053 = vset.pattern.permute.xlu0 0
    %2054 = vperm.xlu0 %2053, %v2032
    %v2055 = vpop.permute.xlu0 %2054
    %2058 = vset.pattern.permute.xlu0 0
    %2059 = vperm.xlu0 %2058, %v2033
    %v2060 = vpop.permute.xlu0 %2059
    %2063 = vset.pattern.permute.xlu0 0
    %2064 = vperm.xlu0 %2063, %v2034
    %v2065 = vpop.permute.xlu0 %2064
    %2068 = vset.pattern.permute.xlu0 0
    %2069 = vperm.xlu0 %2068, %v2035
    %v2070 = vpop.permute.xlu0 %2069
    %2073 = vset.pattern.permute.xlu0 0
    %2074 = vperm.xlu0 %2073, %v2036
    %v2075 = vpop.permute.xlu0 %2074
    %2078 = vset.pattern.permute.xlu0 0
    %2079 = vperm.xlu0 %2078, %v2037
    %v2080 = vpop.permute.xlu0 %2079
    %2083 = vset.pattern.permute.xlu0 0
    %2084 = vperm.xlu0 %2083, %v2038
    %v2085 = vpop.permute.xlu0 %2084
    %2088 = vset.pattern.permute.xlu0 0
    %2089 = vperm.xlu0 %2088, %v2039
    %v2090 = vpop.permute.xlu0 %2089
    %2093 = vset.pattern.permute.xlu0 0
    %2094 = vperm.xlu0 %2093, %v2040
    %v2095 = vpop.permute.xlu0 %2094
    %2098 = vset.pattern.permute.xlu0 0
    %2099 = vperm.xlu0 %2098, %v2041
    %v2100 = vpop.permute.xlu0 %2099
    %2103 = vset.pattern.permute.xlu0 0
    %2104 = vperm.xlu0 %2103, %v2042
    %v2105 = vpop.permute.xlu0 %2104
    %2108 = vset.pattern.permute.xlu0 0
    %2109 = vperm.xlu0 %2108, %v2043
    %v2110 = vpop.permute.xlu0 %2109
    %2113 = vset.pattern.permute.xlu0 0
    %2114 = vperm.xlu0 %2113, %v2044
    %v2115 = vpop.permute.xlu0 %2114
    %2118 = vset.pattern.permute.xlu0 0
    %2119 = vperm.xlu0 %2118, %v2045
    %v2120 = vpop.permute.xlu0 %2119
    %2123 = vset.pattern.permute.xlu0 0
    %2124 = vperm.xlu0 %2123, %v2046
    %v2125 = vpop.permute.xlu0 %2124
    %v2127 = vsub.f32 %v2050, %v1961
    %v2128 = vsub.f32 %v2055, %v1964
    %v2129 = vsub.f32 %v2060, %v1969
    %v2130 = vsub.f32 %v2065, %v1972
    %v2131 = vsub.f32 %v2070, %v1977
    %v2132 = vsub.f32 %v2075, %v1980
    %v2133 = vsub.f32 %v2080, %v1985
    %v2134 = vsub.f32 %v2085, %v1988
    %v2135 = vsub.f32 %v2090, %v1993
    %v2136 = vsub.f32 %v2095, %v1996
    %v2137 = vsub.f32 %v2100, %v2001
    %v2138 = vsub.f32 %v2105, %v2004
    %v2139 = vsub.f32 %v2110, %v2009
    %v2140 = vsub.f32 %v2115, %v2012
    %v2141 = vsub.f32 %v2120, %v2017
    %v2142 = vsub.f32 %v2125, %v2020
    %s2143 = scalar_lea.vmem %s5, 24
    %v2144 = vld [vmem:[%s2143] sm:$0xff]
    %2146 = vset.pattern.permute.xlu0 0
    %2147 = vperm.xlu0 %2146, %v2144
    %v2148 = vpop.permute.xlu0 %2147
    %v2150 = vadd.f32 %v2025, %v2148
    %v2151 = vmin.f32 %v2127, %v2131
    %v2152 = vmin.f32 %v2128, %v2132
    %v2153 = vmin.f32 %v2129, %v2133
    %v2154 = vmin.f32 %v2130, %v2134
    %v2155 = vmin.f32 %v2151, %v2135
    %v2156 = vmin.f32 %v2152, %v2136
    %v2157 = vmin.f32 %v2153, %v2137
    %v2158 = vmin.f32 %v2154, %v2138
    %v2159 = vmin.f32 %v2155, %v2139
    %v2160 = vmin.f32 %v2156, %v2140
    %v2161 = vmin.f32 %v2157, %v2141
    %v2162 = vmin.f32 %v2158, %v2142
    %v2163 = vmin.f32 %v2159, %v2160
    %v2164 = vmin.f32 %v2161, %v2162
    %v2165 = vmin.f32 %v2163, %v2164
    %v2166 = vrot.slane %v2165, 4
    %v2167 = vmin.f32 %v2165, %v2166
    %v2168 = vrot.slane %v2167, 2
    %v2169 = vmin.f32 %v2167, %v2168
    %v2170 = vrot.slane %v2169, 1
    %v2171 = vmin.f32 %v2169, %v2170
    %vm2172 = vcmp.le.f32.partialorder %v2127, %v2171
    %vm2173 = vcmp.le.f32.partialorder %v2128, %v2171
    %vm2174 = vcmp.le.f32.partialorder %v2129, %v2171
    %vm2175 = vcmp.le.f32.partialorder %v2130, %v2171
    %vm2176 = vcmp.le.f32.partialorder %v2131, %v2171
    %vm2177 = vcmp.le.f32.partialorder %v2132, %v2171
    %vm2178 = vcmp.le.f32.partialorder %v2133, %v2171
    %vm2179 = vcmp.le.f32.partialorder %v2134, %v2171
    %vm2180 = vcmp.le.f32.partialorder %v2135, %v2171
    %vm2181 = vcmp.le.f32.partialorder %v2136, %v2171
    %vm2182 = vcmp.le.f32.partialorder %v2137, %v2171
    %vm2183 = vcmp.le.f32.partialorder %v2138, %v2171
    %vm2184 = vcmp.le.f32.partialorder %v2139, %v2171
    %vm2185 = vcmp.le.f32.partialorder %v2140, %v2171
    %vm2186 = vcmp.le.f32.partialorder %v2141, %v2171
    %vm2187 = vcmp.le.f32.partialorder %v2142, %v2171
    %v2188 = vsel %vm2172, %v34, 128
    %v2189 = vsel %vm2173, %v35, 128
    %v2190 = vsel %vm2174, %v36, 128
    %v2191 = vsel %vm2175, %v37, 128
    %v2192 = vsel %vm2176, %v38, 128
    %v2193 = vsel %vm2177, %v39, 128
    %v2194 = vsel %vm2178, %v40, 128
    %v2195 = vsel %vm2179, %v41, 128
    %v2196 = vsel %vm2180, %v42, 128
    %v2197 = vsel %vm2181, %v43, 128
    %v2198 = vsel %vm2182, %v44, 128
    %v2199 = vsel %vm2183, %v45, 128
    %v2200 = vsel %vm2184, %v46, 128
    %v2201 = vsel %vm2185, %v47, 128
    %v2202 = vsel %vm2186, %v48, 128
    %v2203 = vsel %vm2187, %v49, 128
    %vm2204 = vcmp.lt.s32.totalorder %v2188, %v2192
    %v2205 = vsel %vm2204, %v2188, %v2192
    %vm2206 = vcmp.lt.s32.totalorder %v2189, %v2193
    %v2207 = vsel %vm2206, %v2189, %v2193
    %vm2208 = vcmp.lt.s32.totalorder %v2190, %v2194
    %v2209 = vsel %vm2208, %v2190, %v2194
    %vm2210 = vcmp.lt.s32.totalorder %v2191, %v2195
    %v2211 = vsel %vm2210, %v2191, %v2195
    %vm2212 = vcmp.lt.s32.totalorder %v2205, %v2196
    %v2213 = vsel %vm2212, %v2205, %v2196
    %vm2214 = vcmp.lt.s32.totalorder %v2207, %v2197
    %v2215 = vsel %vm2214, %v2207, %v2197
    %vm2216 = vcmp.lt.s32.totalorder %v2209, %v2198
    %v2217 = vsel %vm2216, %v2209, %v2198
    %vm2218 = vcmp.lt.s32.totalorder %v2211, %v2199
    %v2219 = vsel %vm2218, %v2211, %v2199
    %vm2220 = vcmp.lt.s32.totalorder %v2213, %v2200
    %v2221 = vsel %vm2220, %v2213, %v2200
    %vm2222 = vcmp.lt.s32.totalorder %v2215, %v2201
    %v2223 = vsel %vm2222, %v2215, %v2201
    %vm2224 = vcmp.lt.s32.totalorder %v2217, %v2202
    %v2225 = vsel %vm2224, %v2217, %v2202
    %vm2226 = vcmp.lt.s32.totalorder %v2219, %v2203
    %v2227 = vsel %vm2226, %v2219, %v2203
    %vm2228 = vcmp.lt.s32.totalorder %v2221, %v2223
    %v2229 = vsel %vm2228, %v2221, %v2223
    %vm2230 = vcmp.lt.s32.totalorder %v2225, %v2227
    %v2231 = vsel %vm2230, %v2225, %v2227
    %vm2232 = vcmp.lt.s32.totalorder %v2229, %v2231
    %v2233 = vsel %vm2232, %v2229, %v2231
    %v2234 = vrot.slane %v2233, 4
    %vm2235 = vcmp.lt.s32.totalorder %v2233, %v2234
    %v2236 = vsel %vm2235, %v2233, %v2234
    %v2237 = vrot.slane %v2236, 2
    %vm2238 = vcmp.lt.s32.totalorder %v2236, %v2237
    %v2239 = vsel %vm2238, %v2236, %v2237
    %v2240 = vrot.slane %v2239, 1
    %vm2241 = vcmp.lt.s32.totalorder %v2239, %v2240
    %v2242 = vsel %vm2241, %v2239, %v2240
    %vm2243 = vcmp.eq.s32.totalorder %v34, %v2242
    %vm2244 = vcmp.eq.s32.totalorder %v35, %v2242
    %vm2245 = vcmp.eq.s32.totalorder %v36, %v2242
    %vm2246 = vcmp.eq.s32.totalorder %v37, %v2242
    %vm2247 = vcmp.eq.s32.totalorder %v38, %v2242
    %vm2248 = vcmp.eq.s32.totalorder %v39, %v2242
    %vm2249 = vcmp.eq.s32.totalorder %v40, %v2242
    %vm2250 = vcmp.eq.s32.totalorder %v41, %v2242
    %vm2251 = vcmp.eq.s32.totalorder %v42, %v2242
    %vm2252 = vcmp.eq.s32.totalorder %v43, %v2242
    %vm2253 = vcmp.eq.s32.totalorder %v44, %v2242
    %vm2254 = vcmp.eq.s32.totalorder %v45, %v2242
    %vm2255 = vcmp.eq.s32.totalorder %v46, %v2242
    %vm2256 = vcmp.eq.s32.totalorder %v47, %v2242
    %vm2257 = vcmp.eq.s32.totalorder %v48, %v2242
    %vm2258 = vcmp.eq.s32.totalorder %v49, %v2242
    %v2259 = vsel %vm2243, 1, 0
    %v2260 = vsel %vm2244, 1, 0
    %v2261 = vsel %vm2245, 1, 0
    %v2262 = vsel %vm2246, 1, 0
    %v2263 = vsel %vm2247, 1, 0
    %v2264 = vsel %vm2248, 1, 0
    %v2265 = vsel %vm2249, 1, 0
    %v2266 = vsel %vm2250, 1, 0
    %v2267 = vsel %vm2251, 1, 0
    %v2268 = vsel %vm2252, 1, 0
    %v2269 = vsel %vm2253, 1, 0
    %v2270 = vsel %vm2254, 1, 0
    %v2271 = vsel %vm2255, 1, 0
    %v2272 = vsel %vm2256, 1, 0
    %v2273 = vsel %vm2257, 1, 0
    %v2274 = vsel %vm2258, 1, 0
    %v2275 = vcvt.s32.f32 %v2259
    %v2276 = vcvt.s32.f32 %v2260
    %v2277 = vcvt.s32.f32 %v2261
    %v2278 = vcvt.s32.f32 %v2262
    %v2279 = vcvt.s32.f32 %v2263
    %v2280 = vcvt.s32.f32 %v2264
    %v2281 = vcvt.s32.f32 %v2265
    %v2282 = vcvt.s32.f32 %v2266
    %v2283 = vcvt.s32.f32 %v2267
    %v2284 = vcvt.s32.f32 %v2268
    %v2285 = vcvt.s32.f32 %v2269
    %v2286 = vcvt.s32.f32 %v2270
    %v2287 = vcvt.s32.f32 %v2271
    %v2288 = vcvt.s32.f32 %v2272
    %v2289 = vcvt.s32.f32 %v2273
    %v2290 = vcvt.s32.f32 %v2274
    %v2291 = vpack.c.bf16 %v2276, %v2275
    %v2292 = vpack.c.bf16 %v2278, %v2277
    %v2293 = vpack.c.bf16 %v2280, %v2279
    %v2294 = vpack.c.bf16 %v2282, %v2281
    %v2295 = vpack.c.bf16 %v2284, %v2283
    %v2296 = vpack.c.bf16 %v2286, %v2285
    %v2297 = vpack.c.bf16 %v2288, %v2287
    %v2298 = vpack.c.bf16 %v2290, %v2289
    %s2299 = scalar_lea.vmem %s3, 60
    %v2300 = vld [vmem:[%s2299] sm:$0xf]
    %v2301 = vld [vmem:[%s2299 + $0x4] sm:$0xf]
    %v2302 = vld [vmem:[%s2299 + $0x8] sm:$0xf]
    %v2303 = vld [vmem:[%s2299 + $0xc] sm:$0xf]
    %v2304 = vld [vmem:[%s2299 + $0x10] sm:$0xf]
    %v2310 = vunpack.c.l.b16 %v2300
    %v2311 = vunpack.c.l.b16 %v2301
    %v2312 = vunpack.c.l.b16 %v2302
    %v2313 = vunpack.c.l.b16 %v2303
    %v2314 = vunpack.c.l.b16 %v2304
    %v2315 = vpack.c.b16 %v2311, %v2310
    %v2316 = vpack.c.b16 %v2313, %v2312
    %v2317 = vpack.c.b16 %v2314, %v2314
    %2321 = vmatprep.subr.bf16.mxu0 0
    %2322 = vmatpush1.bf16.msra.mxu0 %v2291
    %2323 = vmatprep.subr.bf16.mxu0 0
    %2324 = vmatpush1.bf16.msra.mxu0 %v2292
    %2325 = vmatprep.subr.bf16.mxu0 0
    %2326 = vmatpush1.bf16.msra.mxu0 %v2293
    %2327 = vmatprep.subr.bf16.mxu0 0
    %2328 = vmatpush1.bf16.msra.mxu0 %v2294
    %2329 = vmatprep.subr.bf16.mxu0 0
    %2330 = vmatpush1.bf16.msra.mxu0 %v2295
    %2331 = vmatprep.subr.bf16.mxu0 0
    %2332 = vmatpush1.bf16.msra.mxu0 %v2296
    %2333 = vmatprep.subr.bf16.mxu0 0
    %2334 = vmatpush1.bf16.msra.mxu0 %v2297
    %2335 = vmatprep.subr.bf16.mxu0 0
    %2336 = vmatpush1.bf16.msra.mxu0 %v2298
    %2337 = vmatprep.subr.bf16.mxu0 0
    %2338 = vmatpush1.bf16.msra.mxu0 0
    %2339 = vmatprep.subr.bf16.mxu0 0
    %2340 = vmatpush1.bf16.msra.mxu0 0
    %2341 = vmatprep.subr.bf16.mxu0 0
    %2342 = vmatpush1.bf16.msra.mxu0 0
    %2343 = vmatprep.subr.bf16.mxu0 0
    %2344 = vmatpush1.bf16.msra.mxu0 0
    %2345 = vmatprep.subr.bf16.mxu0 0
    %2346 = vmatpush1.bf16.msra.mxu0 0
    %2347 = vmatprep.subr.bf16.mxu0 0
    %2348 = vmatpush1.bf16.msra.mxu0 0
    %2349 = vmatprep.subr.bf16.mxu0 0
    %2350 = vmatpush1.bf16.msra.mxu0 0
    %2351 = vmatprep.subr.bf16.mxu0 0
    %2352 = vmatpush1.bf16.msra.mxu0 0
    %2353 = vmatprep.mubr.bf16.mxu0 0
    %2354 = vmatmul.mubr.bf16.gmra.mrb[0].mxu0 %v2315
    %v2355 = vpop.f32.mrb[0].mxu0
    %v2356 = vadd.f32 0.0, %v2355
    %v2357 = vpop.f32.mrb[0].mxu0
    %v2358 = vpop.f32.mrb[0].mxu0
    %v2359 = vadd.f32 0.0, %v2358
    %v2360 = vpop.f32.mrb[0].mxu0
    %2361 = vmatprep.mubr.bf16.mxu0 0
    %2362 = vmatmul.mubr.bf16.gmra.mrb[0].mxu0 %v2316
    %v2363 = vpop.f32.mrb[0].mxu0
    %v2364 = vadd.f32 0.0, %v2363
    %v2365 = vpop.f32.mrb[0].mxu0
    %v2366 = vpop.f32.mrb[0].mxu0
    %v2367 = vadd.f32 0.0, %v2366
    %v2368 = vpop.f32.mrb[0].mxu0
    %2369 = vmatprep.mubr.bf16.mxu0 0
    %2370 = vmatmul.mubr.bf16.gmra.mrb[0].mxu0 %v2317
    %v2371 = vpop.f32.mrb[0].mxu0
    %v2372 = vadd.f32 0.0, %v2371
    %v2373 = vpop.f32.mrb[0].mxu0
    %v2374 = vpop.f32.mrb[0].mxu0
    %v2375 = vpop.f32.mrb[0].mxu0
    %2376 = vdwg.mxu0
    %s2377 = scalar_lea.vmem %s4, 96
    %v2378 = vld [vmem:[%s2377] sm:$0xff]
    %v2379 = vld [vmem:[%s2377 + $0x8] sm:$0xff]
    %v2380 = vld [vmem:[%s2377 + $0x10] sm:$0xff]
    %v2381 = vld [vmem:[%s2377 + $0x18] sm:$0xff]
    %2383 = vset.pattern.permute.xlu0 0
    %2384 = vperm.xlu0 %2383, %v2378
    %v2385 = vpop.permute.xlu0 %2384
    %2388 = vset.pattern.permute.xlu0 0
    %2389 = vperm.xlu0 %2388, %v2379
    %v2390 = vpop.permute.xlu0 %2389
    %2393 = vset.pattern.permute.xlu0 0
    %2394 = vperm.xlu0 %2393, %v2380
    %v2395 = vpop.permute.xlu0 %2394
    %2398 = vset.pattern.permute.xlu0 0
    %2399 = vperm.xlu0 %2398, %v2381
    %v2400 = vpop.permute.xlu0 %2399
    %v2402 = vadd.f32 %v2356, %v2385
    %v2403 = vadd.f32 %v2359, %v2390
    %v2404 = vadd.f32 %v2364, %v2395
    %v2405 = vadd.f32 %v2367, %v2400
    %v2406 = vadd.f32 %v1812, %v2402
    %v2407 = vadd.f32 %v1813, %v2403
    %v2408 = vadd.f32 %v1814, %v2404
    %v2409 = vadd.f32 %v1815, %v2405
    %2410 = vst [vmem:[#allocation4 + $0x3] sm:$0x1] %v2242
    %v2411 = vsub.f32 %v2372, %v2150
    %v2412 = vmul.f32 %v2411, %v57
    %v2413 = vmul.f32 %v2412, %v2412
    %2414 = vadd.xlane.f32.xlu0 %v2413
    %v2415 = vpop.xlane.xlu0 %2414
    %v2416 = vrot.slane %v2415, 4
    %v2417 = vadd.f32 %v2415, %v2416
    %v2418 = vrot.slane %v2417, 2
    %v2419 = vadd.f32 %v2417, %v2418
    %v2420 = vrot.slane %v2419, 1
    %v2421 = vadd.f32 %v2419, %v2420
    %s2422 = vtos %v2421
    %v2423 = vstv %s2422
    %v2424 = vadd.f32 %v2423, 0.0
    %2425 = vst [vmem:[#allocation6 + $0x3] sm:$0x1] %v2424
    %2426 = vst [vmem:[#allocation2] sm:$0xff] %v2406
    %2427 = vst [vmem:[#allocation2 + $0x8] sm:$0xff] %v2407
    %2428 = vst [vmem:[#allocation2 + $0x10] sm:$0xff] %v2408
    %2429 = vst [vmem:[#allocation2 + $0x18] sm:$0xff] %v2409
    // Predicated region
    $region26: #{tpu_custom_call.1} parent=1 // pred_check
      _
    $region27: #{tpu_custom_call.1} parent=1 // pred_check_branch
      %2431 = sbr.rel (0) target = $region29
    $region28: #{tpu_custom_call.1} parent=1 // pred_region
      %s2433 = ssub.s32 512, 512
      %2434 = vsyncadd [#allocation3], %s2433
      %s2435 = sshll.u32 [#allocation2], 4
      %s2436 = int_to_ptr.vmem [resolvable:$true] %s2435
      %2441 = dma.vmem_to_hbm [thread:$0]  %s2436, 512, %s6, [#allocation3], 128, 128, 8
    $region29: #{tpu_custom_call.1} parent=1 // pred_fallthru
      _
    // Predicated region
    $region30: #{tpu_custom_call.1} parent=1 // pred_check
      _
    $region31: #{tpu_custom_call.1} parent=1 // pred_check_branch
      %2443 = sbr.rel (0) target = $region33
    $region32: #{tpu_custom_call.1} parent=1 // pred_region
      %s2445 = ssub.s32 64, 64
      %2446 = vsyncadd [#allocation5], %s2445
      %s2448 = sshll.u32 [#allocation4], 4
      %s2449 = int_to_ptr.vmem [resolvable:$true] %s2448
      %2451 = dma.vmem_to_hbm [thread:$0]  %s2449, 64, %s7, [#allocation5]
    $region33: #{tpu_custom_call.1} parent=1 // pred_fallthru
      _
    // Predicated region
    $region34: #{tpu_custom_call.1} parent=1 // pred_check
      _
    $region35: #{tpu_custom_call.1} parent=1 // pred_check_branch
      %2453 = sbr.rel (0) target = $region37
    $region36: #{tpu_custom_call.1} parent=1 // pred_region
      %s2455 = ssub.s32 64, 64
      %2456 = vsyncadd [#allocation5], %s2455
      %s2458 = sshll.u32 [#allocation6], 4
      %s2459 = int_to_ptr.vmem [resolvable:$true] %s2458
      %2461 = dma.vmem_to_hbm [thread:$0]  %s2459, 64, %s8, [#allocation5]
    $region37: #{tpu_custom_call.1} parent=1 // pred_fallthru
      _
    // Predicated region
    $region38: #{tpu_custom_call.1} parent=1 // pred_check
      _
    $region39: #{tpu_custom_call.1} parent=1 // pred_check_branch
      %2463 = sbr.rel (0) target = $region41
    $region40: #{tpu_custom_call.1} parent=1 // pred_region
      %2464 = dma.done [#allocation3], 512
    $region41: #{tpu_custom_call.1} parent=1 // pred_fallthru
      _
    // Predicated region
    $region42: #{tpu_custom_call.1} parent=1 // pred_check
      _
    $region43: #{tpu_custom_call.1} parent=1 // pred_check_branch
      %2466 = sbr.rel (0) target = $region45
    $region44: #{tpu_custom_call.1} parent=1 // pred_region
      %2467 = dma.done [#allocation5], 64
    $region45: #{tpu_custom_call.1} parent=1 // pred_fallthru
      _
    // Predicated region
    $region46: #{tpu_custom_call.1} parent=1 // pred_check
      _
    $region47: #{tpu_custom_call.1} parent=1 // pred_check_branch
      %2469 = sbr.rel (0) target = $region49
    $region48: #{tpu_custom_call.1} parent=1 // pred_region
      %2470 = dma.done [#allocation5], 64
    $region49: #{tpu_custom_call.1} parent=1 // pred_fallthru
      _
    %2471 = vsyncpa [#allocation3], 1
    %2472 = vsyncpa [#allocation5], 1

</llo_original>
